<compile_context>
chip_gen: v7x
topology: tpu7x:2x2x1
jax: 0.10.0
libtpu: 0.0.40
codegen_flags: <defaults>
</compile_context>

<pallas_src>
import numpy as np
import jax
import jax.numpy as jnp
from jax.experimental import pallas as pl
from jax.experimental.pallas import tpu as pltpu

WIDTH = 32            # per-branch width
W3 = 3 * WIDTH        # fused / trunk width (96)
WP = 128              # lane-padded working width (also packed input width)
OUTPUTS = 1
BATCH = 8
NEG_SLOPE = 0.01      # F.leaky_relu default
BN_EPS = 1e-5         # nn.BatchNorm1d default

# dense lane offsets of the three flattened branch inputs inside the (B,128) x
EB_OFF, HB_OFF, HO_OFF = 0, 88, 104          # 81, 12 and 9 real features

N_MATS = 9            # w_first + 8 square (128,128) matrices (w_out is a vslab row)
N_VROWS = 14          # biases / BN scales / folded betas / w_out row / out bias


# --------------------------------- kernel ------------------------------------
def concat_net_kernel(x_ref, w_hbm, v_ref, out_ref, wbuf, sems):
    # Kick off all per-layer weight DMAs (HBM -> VMEM) immediately; each chunk is
    # awaited only right before its matmul, so later copies hide behind compute.
    copies = [pltpu.make_async_copy(w_hbm.at[i], wbuf.at[i], sems.at[i])
              for i in range(N_MATS)]
    for cp in copies:
        cp.start()

    x = x_ref[...]                                    # (B, 128) f32
    # NOTE: assumes no batch padding (padded zero rows would corrupt BN stats).
    inv_b = 1.0 / x.shape[0]

    def vrow(i):                                      # (1, 128) f32 bias/scale row
        return v_ref[i:i + 1, :]

    def leaky(h):                                     # 2 VPU ops (mul + max)
        return jnp.maximum(h, NEG_SLOPE * h)

    def linear(h, i_w, b):                            # bf16 MXU matmul, f32 accum
        copies[i_w].wait()                            # chunk i_w now VMEM-resident
        return jnp.dot(h.astype(jnp.bfloat16), wbuf[i_w],
                       preferred_element_type=jnp.float32) + b

    def resblock(h_in, i_w1, i_w2, i_b1, i_g, i_b2f):
        h = jnp.maximum(linear(h_in, i_w1, vrow(i_b1)), 0.0)
        # train-mode BatchNorm1d with batch stats (biased var); beta is pre-folded
        # into the following bias.  Two independent sublane reductions (no concat).
        mu = jnp.sum(h, axis=0, keepdims=True) * inv_b
        var = jnp.sum(h * h, axis=0, keepdims=True) * inv_b - mu * mu
        hn = (h - mu) * (vrow(i_g) * jax.lax.rsqrt(var + BN_EPS))
        h2 = linear(hn, i_w2, vrow(i_b2f))
        return jnp.maximum(h2 + h_in, 0.0)

    # --- fused eb/hb/ho branch pipeline (block-diag weights, 96 real lanes) ---
    h = leaky(linear(x, 0, vrow(0)))                  # dense (B,128)@(128,128)
    h = resblock(h, 1, 2, 1, 2, 3)                    # fused branch ResBlock
    z = leaky(linear(h, 3, vrow(4)))                  # == leaky(cat([z_eb,z_hb,z_ho]))

    # --- trunk ---
    t = leaky(linear(z, 4, vrow(5)))
    t = resblock(t, 5, 6, 6, 7, 8)
    t = resblock(t, 7, 8, 9, 10, 11)

    # final 96->1 layer: f32 VPU multiply + XLU lane reduce (no 128x128 matmul)
    out_ref[...] = (jnp.sum(t * vrow(12), axis=1, keepdims=True)
                    + vrow(13)[:, :OUTPUTS])


# --------------------------------- wrapper -----------------------------------
def _assemble_input(x_eb, x_hb, x_ho):
    """Flatten + densely pack the three inputs into one (B, 128) array."""
    b = x_eb.shape[0]
    xe = x_eb.reshape(b, -1)                          # 81
    xh = x_hb.reshape(b, -1)                          # 12
    xo = x_ho.reshape(b, -1)                          # 9
    x = jnp.zeros((b, WP), jnp.float32)
    x = x.at[:, EB_OFF:EB_OFF + xe.shape[1]].set(xe)
    x = x.at[:, HB_OFF:HB_OFF + xh.shape[1]].set(xh)
    x = x.at[:, HO_OFF:HO_OFF + xo.shape[1]].set(xo)
    return x


@jax.jit
def concat_net(x_eb, x_hb, x_ho, packed_params):
    wslab, vslab = packed_params                      # (9,128,128) bf16, (14,128) f32
    b = x_eb.shape[0]
    x = _assemble_input(x_eb, x_hb, x_ho)

    flops = 2 * b * N_MATS * WP * WP
    bytes_accessed = 4 * b * WP + 2 * wslab.size + 4 * vslab.size + 4 * b * OUTPUTS
    ce = pl.CostEstimate(flops=flops, transcendentals=3 * WP,
                         bytes_accessed=bytes_accessed)

    # Whole problem (<1 MiB incl. scratch) fits in VMEM on all generations: no grid.
    # TODO(synk): for a steady-state inference loop, hoist the weight DMA entirely
    # via a cross-call prefetch (semaphore-valued output consumed here).
    out = pl.pallas_call(
        concat_net_kernel,
        out_shape=jax.ShapeDtypeStruct((b, OUTPUTS), jnp.float32),
        in_specs=[pl.BlockSpec(memory_space=pltpu.MemorySpace.VMEM),   # x
                  pl.BlockSpec(memory_space=pl.ANY),                   # weight slab (manual DMA)
                  pl.BlockSpec(memory_space=pltpu.MemorySpace.VMEM)],  # bias/scale slab
        out_specs=pl.BlockSpec(memory_space=pltpu.MemorySpace.VMEM),
        scratch_shapes=[pltpu.VMEM((N_MATS, WP, WP), jnp.bfloat16),
                        pltpu.SemaphoreType.DMA((N_MATS,))],
        cost_estimate=ce,
    )(x, wslab, vslab)
    return out


# --------------------------- parameter packing --------------------------------
def pack_params(params):
    """Pack the 46 tensors into (wslab (9,128,128) bf16, vslab (14,128) f32)."""
    eb, hb, ho, tr = params[:10], params[10:20], params[20:30], params[30:46]
    branches = [eb, hb, ho]
    in_offs = [EB_OFF, HB_OFF, HO_OFF]

    def embed(mat, r0, c0, out):
        m = np.asarray(mat, np.float32)
        out[r0:r0 + m.shape[0], c0:c0 + m.shape[1]] = m

    def blockdiag3(ms):                                # 3x(32,32) -> (128,128)
        out = np.zeros((WP, WP), np.float32)
        for i, m in enumerate(ms):
            embed(m, i * WIDTH, i * WIDTH, out)
        return out

    def rowcat3(vs):                                   # 3x(1,32) -> (1,128)
        out = np.zeros((1, WP), np.float32)
        for i, v in enumerate(vs):
            out[0, i * WIDTH:(i + 1) * WIDTH] = np.asarray(v, np.float32).reshape(-1)
        return out

    def embed_sq(m):                                   # (96,96) -> (128,128)
        out = np.zeros((WP, WP), np.float32)
        embed(m, 0, 0, out)
        return out

    def embed_row(v):                                  # (<=128,) -> (1,128)
        out = np.zeros((1, WP), np.float32)
        vv = np.asarray(v, np.float32).reshape(-1)
        out[0, :vv.size] = vv
        return out

    # dense fused first layer: branch i's rows at lane offset in_offs[i]
    w_first = np.zeros((WP, WP), np.float32)
    b_first = np.zeros((1, WP), np.float32)
    for i, p in enumerate(branches):
        embed(p[0], in_offs[i], i * WIDTH, w_first)
        b_first[0, i * WIDTH:(i + 1) * WIDTH] = np.asarray(p[1], np.float32).reshape(-1)

    # fused branch ResBlock + branch output layer
    w1_b = blockdiag3([p[2] for p in branches]); b1_b = rowcat3([p[3] for p in branches])
    g_b = rowcat3([p[4] for p in branches]);     bt_b = rowcat3([p[5] for p in branches])
    w2_b = blockdiag3([p[6] for p in branches]); b2_b = rowcat3([p[7] for p in branches])
    w3_b = blockdiag3([p[8] for p in branches]); b3_b = rowcat3([p[9] for p in branches])

    # trunk
    w0_t = embed_sq(tr[0]);   b0_t = embed_row(tr[1])
    w1_t1 = embed_sq(tr[2]);  b1_t1 = embed_row(tr[3])
    g_t1 = embed_row(tr[4]);  bt_t1 = embed_row(tr[5])
    w2_t1 = embed_sq(tr[6]);  b2_t1 = embed_row(tr[7])
    w1_t2 = embed_sq(tr[8]);  b1_t2 = embed_row(tr[9])
    g_t2 = embed_row(tr[10]); bt_t2 = embed_row(tr[11])
    w2_t2 = embed_sq(tr[12]); b2_t2 = embed_row(tr[13])
    wout_row = embed_row(tr[14])                       # (96,1) -> (1,128) row
    b_out = np.zeros((1, WP), np.float32)
    b_out[0, :OUTPUTS] = np.asarray(tr[15], np.float32).reshape(-1)

    # fold BN beta into the resblock's second bias (in f32): b2' = beta @ w2 + b2
    def fold(beta_row, w2_pad, b2_row):
        return beta_row @ w2_pad + b2_row

    b2f_b = fold(bt_b, w2_b, b2_b)
    b2f_t1 = fold(bt_t1, w2_t1, b2_t1)
    b2f_t2 = fold(bt_t2, w2_t2, b2_t2)

    mats = np.stack([w_first, w1_b, w2_b, w3_b, w0_t,
                     w1_t1, w2_t1, w1_t2, w2_t2], axis=0)
    vslab = np.concatenate([b_first, b1_b, g_b, b2f_b, b3_b, b0_t,
                            b1_t1, g_t1, b2f_t1, b1_t2, g_t2, b2f_t2,
                            wout_row, b_out], axis=0)
    assert mats.shape == (N_MATS, WP, WP) and vslab.shape == (N_VROWS, WP)
    return jnp.asarray(mats, dtype=jnp.bfloat16), jnp.asarray(vslab, dtype=jnp.float32)


# ------------------------- deterministic parameter init ----------------------
def _init_linear(key, fin, fout):
    k1, k2 = jax.random.split(key)
    bound = 1.0 / np.sqrt(fin)
    w = jax.random.uniform(k1, (fin, fout), jnp.float32, -bound, bound)
    b = jax.random.uniform(k2, (1, fout), jnp.float32, -bound, bound)
    return w, b


def _init_resblock(key, width):
    k1, k2, k3, k4 = jax.random.split(key, 4)
    w1, b1 = _init_linear(k1, width, width)
    gamma = 1.0 + 0.01 * jax.random.normal(k3, (1, width), jnp.float32)
    beta = 0.01 * jax.random.normal(k4, (1, width), jnp.float32)
    w2, b2 = _init_linear(k2, width, width)
    return [w1, b1, gamma, beta, w2, b2]


def _init_branch(key, fin, width):
    k0, k1, k2 = jax.random.split(key, 3)
    w0, b0 = _init_linear(k0, fin, width)
    res = _init_resblock(k1, width)
    w3, b3 = _init_linear(k2, width, width)
    return [w0, b0] + res + [w3, b3]


def _init_trunk(key, width3, outputs):
    k0, k1, k2, k3 = jax.random.split(key, 4)
    w0, b0 = _init_linear(k0, width3, width3)
    r1 = _init_resblock(k1, width3)
    r2 = _init_resblock(k2, width3)
    w3, b3 = _init_linear(k3, width3, outputs)
    return [w0, b0] + r1 + r2 + [w3, b3]


# ------------------------- plain-JAX reference (mirrors PyTorch) --------------
def _leaky_ref(x):
    return jnp.where(x > 0, x, NEG_SLOPE * x)


def _linear_ref(x, w, b):
    return x @ w + b


def _resblock_ref(x, w1, b1, g, bt, w2, b2):
    h = jnp.maximum(_linear_ref(x, w1, b1), 0.0)
    mu = jnp.mean(h, axis=0, keepdims=True)
    var = jnp.mean(jnp.square(h - mu), axis=0, keepdims=True)
    h = (h - mu) * jax.lax.rsqrt(var + BN_EPS) * g + bt
    return jnp.maximum(_linear_ref(h, w2, b2) + x, 0.0)


def _branch_ref(x, p):
    w0, b0, w1, b1, g, bt, w2, b2, w3, b3 = p
    h = _leaky_ref(_linear_ref(x.reshape(x.shape[0], -1), w0, b0))
    h = _resblock_ref(h, w1, b1, g, bt, w2, b2)
    return _linear_ref(h, w3, b3)


def _reference(x_eb, x_hb, x_ho, params):
    eb, hb, ho, tr = params[:10], params[10:20], params[20:30], params[30:46]
    z = jnp.concatenate([_branch_ref(x_eb, eb), _branch_ref(x_hb, hb),
                         _branch_ref(x_ho, ho)], axis=1)
    z = _leaky_ref(z)
    h = _leaky_ref(_linear_ref(z, tr[0], tr[1]))
    h = _resblock_ref(h, *tr[2:8])
    h = _resblock_ref(h, *tr[8:14])
    return _linear_ref(h, tr[14], tr[15])


if __name__ == "__main__":
    key = jax.random.PRNGKey(0)
    k_eb, k_hb, k_ho, k_tr, kx1, kx2, kx3 = jax.random.split(key, 7)

    params = (_init_branch(k_eb, 9 * 9, WIDTH)
              + _init_branch(k_hb, 3 * 4, WIDTH)
              + _init_branch(k_ho, 3 * 3, WIDTH)
              + _init_trunk(k_tr, 3 * WIDTH, OUTPUTS))
    packed = pack_params(params)

    x_eb = jax.random.normal(kx1, (BATCH, 9, 9), jnp.float32)
    x_hb = jax.random.normal(kx2, (BATCH, 3, 4), jnp.float32)
    x_ho = jax.random.normal(kx3, (BATCH, 3, 3), jnp.float32)

    out = jax.block_until_ready(concat_net(x_eb, x_hb, x_ho, packed))
    assert out.shape == (BATCH, OUTPUTS)

    ref = jax.block_until_ready(_reference(x_eb, x_hb, x_ho, params))
    # bf16 weights + bf16 matmul inputs (f32 accumulation / biases / BN) vs the
    # pure-f32 PyTorch-semantics reference -> tolerance loosened from 1e-4.
    np.testing.assert_allclose(np.asarray(out), np.asarray(ref), rtol=5e-2, atol=5e-2)

    print("KERNEL_OK")
</pallas_src>

<mosaic_0001>
module attributes {stable_mosaic.version = 11 : i64} {
  func.func @concat_net_kernel(%arg0: memref<8x128xf32, #tpu.memory_space<vmem>>, %arg1: memref<9x128x128xbf16, #tpu.memory_space<any>>, %arg2: memref<14x128xf32, #tpu.memory_space<vmem>>, %arg3: memref<8x1xf32, #tpu.memory_space<vmem>>, %arg4: memref<9x128x128xbf16, #tpu.memory_space<vmem>>, %arg5: memref<9x!tpu.dma_semaphore, #tpu.memory_space<semaphore_mem>>) attributes {dimension_semantics = [], scalar_prefetch = 0 : i64, scratch_operands = 2 : i64, tpu.core_type = #tpu.core_type<tc>} {
    %c0_i32 = arith.constant 0 : i32
    %c0_i32_0 = arith.constant 0 : i32
    %c0_i32_1 = arith.constant 0 : i32
    %c0_i32_2 = arith.constant 0 : i32
    %c0_i32_3 = arith.constant 0 : i32
    %0 = tpu.memref_slice %arg1[%c0_i32, %c0_i32_2, %c0_i32_3] : memref<9x128x128xbf16, #tpu.memory_space<any>> -> memref<1x128x128xbf16, #tpu.memory_space<any>>
    %1 = tpu.memref_squeeze %0 : memref<1x128x128xbf16, #tpu.memory_space<any>> -> memref<128x128xbf16, #tpu.memory_space<any>>
    %c0_i32_4 = arith.constant 0 : i32
    %c0_i32_5 = arith.constant 0 : i32
    %2 = tpu.memref_slice %arg4[%c0_i32_0, %c0_i32_4, %c0_i32_5] : memref<9x128x128xbf16, #tpu.memory_space<vmem>> -> memref<1x128x128xbf16, #tpu.memory_space<vmem>>
    %3 = tpu.memref_squeeze %2 : memref<1x128x128xbf16, #tpu.memory_space<vmem>> -> memref<128x128xbf16, #tpu.memory_space<vmem>>
    %4 = tpu.memref_slice %arg5[%c0_i32_1] : memref<9x!tpu.dma_semaphore, #tpu.memory_space<semaphore_mem>> -> memref<1x!tpu.dma_semaphore, #tpu.memory_space<semaphore_mem>>
    %5 = tpu.memref_squeeze %4 : memref<1x!tpu.dma_semaphore, #tpu.memory_space<semaphore_mem>> -> memref<!tpu.dma_semaphore, #tpu.memory_space<semaphore_mem>>
    tpu.enqueue_dma source(%1 : memref<128x128xbf16, #tpu.memory_space<any>>) target(%3 : memref<128x128xbf16, #tpu.memory_space<vmem>>) target_semaphore(%5 : memref<!tpu.dma_semaphore, #tpu.memory_space<semaphore_mem>>)
    %c1_i32 = arith.constant 1 : i32
    %c1_i32_6 = arith.constant 1 : i32
    %c1_i32_7 = arith.constant 1 : i32
    %c0_i32_8 = arith.constant 0 : i32
    %c0_i32_9 = arith.constant 0 : i32
    %6 = tpu.memref_slice %arg1[%c1_i32, %c0_i32_8, %c0_i32_9] : memref<9x128x128xbf16, #tpu.memory_space<any>> -> memref<1x128x128xbf16, #tpu.memory_space<any>>
    %7 = tpu.memref_squeeze %6 : memref<1x128x128xbf16, #tpu.memory_space<any>> -> memref<128x128xbf16, #tpu.memory_space<any>>
    %c0_i32_10 = arith.constant 0 : i32
    %c0_i32_11 = arith.constant 0 : i32
    %8 = tpu.memref_slice %arg4[%c1_i32_6, %c0_i32_10, %c0_i32_11] : memref<9x128x128xbf16, #tpu.memory_space<vmem>> -> memref<1x128x128xbf16, #tpu.memory_space<vmem>>
    %9 = tpu.memref_squeeze %8 : memref<1x128x128xbf16, #tpu.memory_space<vmem>> -> memref<128x128xbf16, #tpu.memory_space<vmem>>
    %10 = tpu.memref_slice %arg5[%c1_i32_7] : memref<9x!tpu.dma_semaphore, #tpu.memory_space<semaphore_mem>> -> memref<1x!tpu.dma_semaphore, #tpu.memory_space<semaphore_mem>>
    %11 = tpu.memref_squeeze %10 : memref<1x!tpu.dma_semaphore, #tpu.memory_space<semaphore_mem>> -> memref<!tpu.dma_semaphore, #tpu.memory_space<semaphore_mem>>
    tpu.enqueue_dma source(%7 : memref<128x128xbf16, #tpu.memory_space<any>>) target(%9 : memref<128x128xbf16, #tpu.memory_space<vmem>>) target_semaphore(%11 : memref<!tpu.dma_semaphore, #tpu.memory_space<semaphore_mem>>)
    %c2_i32 = arith.constant 2 : i32
    %c2_i32_12 = arith.constant 2 : i32
    %c2_i32_13 = arith.constant 2 : i32
    %c0_i32_14 = arith.constant 0 : i32
    %c0_i32_15 = arith.constant 0 : i32
    %12 = tpu.memref_slice %arg1[%c2_i32, %c0_i32_14, %c0_i32_15] : memref<9x128x128xbf16, #tpu.memory_space<any>> -> memref<1x128x128xbf16, #tpu.memory_space<any>>
    %13 = tpu.memref_squeeze %12 : memref<1x128x128xbf16, #tpu.memory_space<any>> -> memref<128x128xbf16, #tpu.memory_space<any>>
    %c0_i32_16 = arith.constant 0 : i32
    %c0_i32_17 = arith.constant 0 : i32
    %14 = tpu.memref_slice %arg4[%c2_i32_12, %c0_i32_16, %c0_i32_17] : memref<9x128x128xbf16, #tpu.memory_space<vmem>> -> memref<1x128x128xbf16, #tpu.memory_space<vmem>>
    %15 = tpu.memref_squeeze %14 : memref<1x128x128xbf16, #tpu.memory_space<vmem>> -> memref<128x128xbf16, #tpu.memory_space<vmem>>
    %16 = tpu.memref_slice %arg5[%c2_i32_13] : memref<9x!tpu.dma_semaphore, #tpu.memory_space<semaphore_mem>> -> memref<1x!tpu.dma_semaphore, #tpu.memory_space<semaphore_mem>>
    %17 = tpu.memref_squeeze %16 : memref<1x!tpu.dma_semaphore, #tpu.memory_space<semaphore_mem>> -> memref<!tpu.dma_semaphore, #tpu.memory_space<semaphore_mem>>
    tpu.enqueue_dma source(%13 : memref<128x128xbf16, #tpu.memory_space<any>>) target(%15 : memref<128x128xbf16, #tpu.memory_space<vmem>>) target_semaphore(%17 : memref<!tpu.dma_semaphore, #tpu.memory_space<semaphore_mem>>)
    %c3_i32 = arith.constant 3 : i32
    %c3_i32_18 = arith.constant 3 : i32
    %c3_i32_19 = arith.constant 3 : i32
    %c0_i32_20 = arith.constant 0 : i32
    %c0_i32_21 = arith.constant 0 : i32
    %18 = tpu.memref_slice %arg1[%c3_i32, %c0_i32_20, %c0_i32_21] : memref<9x128x128xbf16, #tpu.memory_space<any>> -> memref<1x128x128xbf16, #tpu.memory_space<any>>
    %19 = tpu.memref_squeeze %18 : memref<1x128x128xbf16, #tpu.memory_space<any>> -> memref<128x128xbf16, #tpu.memory_space<any>>
    %c0_i32_22 = arith.constant 0 : i32
    %c0_i32_23 = arith.constant 0 : i32
    %20 = tpu.memref_slice %arg4[%c3_i32_18, %c0_i32_22, %c0_i32_23] : memref<9x128x128xbf16, #tpu.memory_space<vmem>> -> memref<1x128x128xbf16, #tpu.memory_space<vmem>>
    %21 = tpu.memref_squeeze %20 : memref<1x128x128xbf16, #tpu.memory_space<vmem>> -> memref<128x128xbf16, #tpu.memory_space<vmem>>
    %22 = tpu.memref_slice %arg5[%c3_i32_19] : memref<9x!tpu.dma_semaphore, #tpu.memory_space<semaphore_mem>> -> memref<1x!tpu.dma_semaphore, #tpu.memory_space<semaphore_mem>>
    %23 = tpu.memref_squeeze %22 : memref<1x!tpu.dma_semaphore, #tpu.memory_space<semaphore_mem>> -> memref<!tpu.dma_semaphore, #tpu.memory_space<semaphore_mem>>
    tpu.enqueue_dma source(%19 : memref<128x128xbf16, #tpu.memory_space<any>>) target(%21 : memref<128x128xbf16, #tpu.memory_space<vmem>>) target_semaphore(%23 : memref<!tpu.dma_semaphore, #tpu.memory_space<semaphore_mem>>)
    %c4_i32 = arith.constant 4 : i32
    %c4_i32_24 = arith.constant 4 : i32
    %c4_i32_25 = arith.constant 4 : i32
    %c0_i32_26 = arith.constant 0 : i32
    %c0_i32_27 = arith.constant 0 : i32
    %24 = tpu.memref_slice %arg1[%c4_i32, %c0_i32_26, %c0_i32_27] : memref<9x128x128xbf16, #tpu.memory_space<any>> -> memref<1x128x128xbf16, #tpu.memory_space<any>>
    %25 = tpu.memref_squeeze %24 : memref<1x128x128xbf16, #tpu.memory_space<any>> -> memref<128x128xbf16, #tpu.memory_space<any>>
    %c0_i32_28 = arith.constant 0 : i32
    %c0_i32_29 = arith.constant 0 : i32
    %26 = tpu.memref_slice %arg4[%c4_i32_24, %c0_i32_28, %c0_i32_29] : memref<9x128x128xbf16, #tpu.memory_space<vmem>> -> memref<1x128x128xbf16, #tpu.memory_space<vmem>>
    %27 = tpu.memref_squeeze %26 : memref<1x128x128xbf16, #tpu.memory_space<vmem>> -> memref<128x128xbf16, #tpu.memory_space<vmem>>
    %28 = tpu.memref_slice %arg5[%c4_i32_25] : memref<9x!tpu.dma_semaphore, #tpu.memory_space<semaphore_mem>> -> memref<1x!tpu.dma_semaphore, #tpu.memory_space<semaphore_mem>>
    %29 = tpu.memref_squeeze %28 : memref<1x!tpu.dma_semaphore, #tpu.memory_space<semaphore_mem>> -> memref<!tpu.dma_semaphore, #tpu.memory_space<semaphore_mem>>
    tpu.enqueue_dma source(%25 : memref<128x128xbf16, #tpu.memory_space<any>>) target(%27 : memref<128x128xbf16, #tpu.memory_space<vmem>>) target_semaphore(%29 : memref<!tpu.dma_semaphore, #tpu.memory_space<semaphore_mem>>)
    %c5_i32 = arith.constant 5 : i32
    %c5_i32_30 = arith.constant 5 : i32
    %c5_i32_31 = arith.constant 5 : i32
    %c0_i32_32 = arith.constant 0 : i32
    %c0_i32_33 = arith.constant 0 : i32
    %30 = tpu.memref_slice %arg1[%c5_i32, %c0_i32_32, %c0_i32_33] : memref<9x128x128xbf16, #tpu.memory_space<any>> -> memref<1x128x128xbf16, #tpu.memory_space<any>>
    %31 = tpu.memref_squeeze %30 : memref<1x128x128xbf16, #tpu.memory_space<any>> -> memref<128x128xbf16, #tpu.memory_space<any>>
    %c0_i32_34 = arith.constant 0 : i32
    %c0_i32_35 = arith.constant 0 : i32
    %32 = tpu.memref_slice %arg4[%c5_i32_30, %c0_i32_34, %c0_i32_35] : memref<9x128x128xbf16, #tpu.memory_space<vmem>> -> memref<1x128x128xbf16, #tpu.memory_space<vmem>>
    %33 = tpu.memref_squeeze %32 : memref<1x128x128xbf16, #tpu.memory_space<vmem>> -> memref<128x128xbf16, #tpu.memory_space<vmem>>
    %34 = tpu.memref_slice %arg5[%c5_i32_31] : memref<9x!tpu.dma_semaphore, #tpu.memory_space<semaphore_mem>> -> memref<1x!tpu.dma_semaphore, #tpu.memory_space<semaphore_mem>>
    %35 = tpu.memref_squeeze %34 : memref<1x!tpu.dma_semaphore, #tpu.memory_space<semaphore_mem>> -> memref<!tpu.dma_semaphore, #tpu.memory_space<semaphore_mem>>
    tpu.enqueue_dma source(%31 : memref<128x128xbf16, #tpu.memory_space<any>>) target(%33 : memref<128x128xbf16, #tpu.memory_space<vmem>>) target_semaphore(%35 : memref<!tpu.dma_semaphore, #tpu.memory_space<semaphore_mem>>)
    %c6_i32 = arith.constant 6 : i32
    %c6_i32_36 = arith.constant 6 : i32
    %c6_i32_37 = arith.constant 6 : i32
    %c0_i32_38 = arith.constant 0 : i32
    %c0_i32_39 = arith.constant 0 : i32
    %36 = tpu.memref_slice %arg1[%c6_i32, %c0_i32_38, %c0_i32_39] : memref<9x128x128xbf16, #tpu.memory_space<any>> -> memref<1x128x128xbf16, #tpu.memory_space<any>>
    %37 = tpu.memref_squeeze %36 : memref<1x128x128xbf16, #tpu.memory_space<any>> -> memref<128x128xbf16, #tpu.memory_space<any>>
    %c0_i32_40 = arith.constant 0 : i32
    %c0_i32_41 = arith.constant 0 : i32
    %38 = tpu.memref_slice %arg4[%c6_i32_36, %c0_i32_40, %c0_i32_41] : memref<9x128x128xbf16, #tpu.memory_space<vmem>> -> memref<1x128x128xbf16, #tpu.memory_space<vmem>>
    %39 = tpu.memref_squeeze %38 : memref<1x128x128xbf16, #tpu.memory_space<vmem>> -> memref<128x128xbf16, #tpu.memory_space<vmem>>
    %40 = tpu.memref_slice %arg5[%c6_i32_37] : memref<9x!tpu.dma_semaphore, #tpu.memory_space<semaphore_mem>> -> memref<1x!tpu.dma_semaphore, #tpu.memory_space<semaphore_mem>>
    %41 = tpu.memref_squeeze %40 : memref<1x!tpu.dma_semaphore, #tpu.memory_space<semaphore_mem>> -> memref<!tpu.dma_semaphore, #tpu.memory_space<semaphore_mem>>
    tpu.enqueue_dma source(%37 : memref<128x128xbf16, #tpu.memory_space<any>>) target(%39 : memref<128x128xbf16, #tpu.memory_space<vmem>>) target_semaphore(%41 : memref<!tpu.dma_semaphore, #tpu.memory_space<semaphore_mem>>)
    %c7_i32 = arith.constant 7 : i32
    %c7_i32_42 = arith.constant 7 : i32
    %c7_i32_43 = arith.constant 7 : i32
    %c0_i32_44 = arith.constant 0 : i32
    %c0_i32_45 = arith.constant 0 : i32
    %42 = tpu.memref_slice %arg1[%c7_i32, %c0_i32_44, %c0_i32_45] : memref<9x128x128xbf16, #tpu.memory_space<any>> -> memref<1x128x128xbf16, #tpu.memory_space<any>>
    %43 = tpu.memref_squeeze %42 : memref<1x128x128xbf16, #tpu.memory_space<any>> -> memref<128x128xbf16, #tpu.memory_space<any>>
    %c0_i32_46 = arith.constant 0 : i32
    %c0_i32_47 = arith.constant 0 : i32
    %44 = tpu.memref_slice %arg4[%c7_i32_42, %c0_i32_46, %c0_i32_47] : memref<9x128x128xbf16, #tpu.memory_space<vmem>> -> memref<1x128x128xbf16, #tpu.memory_space<vmem>>
    %45 = tpu.memref_squeeze %44 : memref<1x128x128xbf16, #tpu.memory_space<vmem>> -> memref<128x128xbf16, #tpu.memory_space<vmem>>
    %46 = tpu.memref_slice %arg5[%c7_i32_43] : memref<9x!tpu.dma_semaphore, #tpu.memory_space<semaphore_mem>> -> memref<1x!tpu.dma_semaphore, #tpu.memory_space<semaphore_mem>>
    %47 = tpu.memref_squeeze %46 : memref<1x!tpu.dma_semaphore, #tpu.memory_space<semaphore_mem>> -> memref<!tpu.dma_semaphore, #tpu.memory_space<semaphore_mem>>
    tpu.enqueue_dma source(%43 : memref<128x128xbf16, #tpu.memory_space<any>>) target(%45 : memref<128x128xbf16, #tpu.memory_space<vmem>>) target_semaphore(%47 : memref<!tpu.dma_semaphore, #tpu.memory_space<semaphore_mem>>)
    %c8_i32 = arith.constant 8 : i32
    %c8_i32_48 = arith.constant 8 : i32
    %c8_i32_49 = arith.constant 8 : i32
    %c0_i32_50 = arith.constant 0 : i32
    %c0_i32_51 = arith.constant 0 : i32
    %48 = tpu.memref_slice %arg1[%c8_i32, %c0_i32_50, %c0_i32_51] : memref<9x128x128xbf16, #tpu.memory_space<any>> -> memref<1x128x128xbf16, #tpu.memory_space<any>>
    %49 = tpu.memref_squeeze %48 : memref<1x128x128xbf16, #tpu.memory_space<any>> -> memref<128x128xbf16, #tpu.memory_space<any>>
    %c0_i32_52 = arith.constant 0 : i32
    %c0_i32_53 = arith.constant 0 : i32
    %50 = tpu.memref_slice %arg4[%c8_i32_48, %c0_i32_52, %c0_i32_53] : memref<9x128x128xbf16, #tpu.memory_space<vmem>> -> memref<1x128x128xbf16, #tpu.memory_space<vmem>>
    %51 = tpu.memref_squeeze %50 : memref<1x128x128xbf16, #tpu.memory_space<vmem>> -> memref<128x128xbf16, #tpu.memory_space<vmem>>
    %52 = tpu.memref_slice %arg5[%c8_i32_49] : memref<9x!tpu.dma_semaphore, #tpu.memory_space<semaphore_mem>> -> memref<1x!tpu.dma_semaphore, #tpu.memory_space<semaphore_mem>>
    %53 = tpu.memref_squeeze %52 : memref<1x!tpu.dma_semaphore, #tpu.memory_space<semaphore_mem>> -> memref<!tpu.dma_semaphore, #tpu.memory_space<semaphore_mem>>
    tpu.enqueue_dma source(%49 : memref<128x128xbf16, #tpu.memory_space<any>>) target(%51 : memref<128x128xbf16, #tpu.memory_space<vmem>>) target_semaphore(%53 : memref<!tpu.dma_semaphore, #tpu.memory_space<semaphore_mem>>)
    %c0 = arith.constant 0 : index
    %c0_54 = arith.constant 0 : index
    %54 = vector.load %arg0[%c0, %c0_54] : memref<8x128xf32, #tpu.memory_space<vmem>>, vector<8x128xf32>
    %c0_55 = arith.constant 0 : index
    %c0_56 = arith.constant 0 : index
    %55 = vector.load %arg2[%c0_55, %c0_56] : memref<14x128xf32, #tpu.memory_space<vmem>>, vector<1x128xf32>
    %c0_i32_57 = arith.constant 0 : i32
    %c0_i32_58 = arith.constant 0 : i32
    %c0_i32_59 = arith.constant 0 : i32
    %c0_i32_60 = arith.constant 0 : i32
    %c0_i32_61 = arith.constant 0 : i32
    %56 = tpu.memref_slice %arg1[%c0_i32_57, %c0_i32_60, %c0_i32_61] : memref<9x128x128xbf16, #tpu.memory_space<any>> -> memref<1x128x128xbf16, #tpu.memory_space<any>>
    %57 = tpu.memref_squeeze %56 : memref<1x128x128xbf16, #tpu.memory_space<any>> -> memref<128x128xbf16, #tpu.memory_space<any>>
    %c0_i32_62 = arith.constant 0 : i32
    %c0_i32_63 = arith.constant 0 : i32
    %58 = tpu.memref_slice %arg4[%c0_i32_58, %c0_i32_62, %c0_i32_63] : memref<9x128x128xbf16, #tpu.memory_space<vmem>> -> memref<1x128x128xbf16, #tpu.memory_space<vmem>>
    %59 = tpu.memref_squeeze %58 : memref<1x128x128xbf16, #tpu.memory_space<vmem>> -> memref<128x128xbf16, #tpu.memory_space<vmem>>
    %60 = tpu.memref_slice %arg5[%c0_i32_59] : memref<9x!tpu.dma_semaphore, #tpu.memory_space<semaphore_mem>> -> memref<1x!tpu.dma_semaphore, #tpu.memory_space<semaphore_mem>>
    %61 = tpu.memref_squeeze %60 : memref<1x!tpu.dma_semaphore, #tpu.memory_space<semaphore_mem>> -> memref<!tpu.dma_semaphore, #tpu.memory_space<semaphore_mem>>
    tpu.wait_dma2 semaphore(%61 : memref<!tpu.dma_semaphore, #tpu.memory_space<semaphore_mem>>) src(%57 : memref<128x128xbf16, #tpu.memory_space<any>>) dst(%59 : memref<128x128xbf16, #tpu.memory_space<vmem>>)
    %62 = arith.truncf %54 : vector<8x128xf32> to vector<8x128xbf16>
    %c0_64 = arith.constant 0 : index
    %c0_65 = arith.constant 0 : index
    %c0_66 = arith.constant 0 : index
    %63 = vector.load %arg4[%c0_64, %c0_65, %c0_66] : memref<9x128x128xbf16, #tpu.memory_space<vmem>>, vector<1x128x128xbf16>
    %64 = vector.shape_cast %63 : vector<1x128x128xbf16> to vector<128x128xbf16>
    %cst = arith.constant dense<0.000000e+00> : vector<8x128xf32>
    %65 = tpu.matmul %62, %64, %cst {dimension_numbers = #tpu.dot_dimension_numbers<[1], [0], [0], [1], [0, 0, 1, 1], [], []>} : vector<8x128xbf16>, vector<128x128xbf16>, vector<8x128xf32> -> vector<8x128xf32>
    %66 = vector.broadcast %55 : vector<1x128xf32> to vector<8x128xf32>
    %67 = arith.addf %65, %66 : vector<8x128xf32>
    %cst_67 = arith.constant 0.00999999977 : f32
    %68 = vector.broadcast %cst_67 : f32 to vector<8x128xf32>
    %69 = arith.mulf %68, %67 : vector<8x128xf32>
    %70 = arith.maximumf %67, %69 : vector<8x128xf32>
    %c1 = arith.constant 1 : index
    %c0_68 = arith.constant 0 : index
    %71 = vector.load %arg2[%c1, %c0_68] : memref<14x128xf32, #tpu.memory_space<vmem>>, vector<1x128xf32>
    %c1_i32_69 = arith.constant 1 : i32
    %c1_i32_70 = arith.constant 1 : i32
    %c1_i32_71 = arith.constant 1 : i32
    %c0_i32_72 = arith.constant 0 : i32
    %c0_i32_73 = arith.constant 0 : i32
    %72 = tpu.memref_slice %arg1[%c1_i32_69, %c0_i32_72, %c0_i32_73] : memref<9x128x128xbf16, #tpu.memory_space<any>> -> memref<1x128x128xbf16, #tpu.memory_space<any>>
    %73 = tpu.memref_squeeze %72 : memref<1x128x128xbf16, #tpu.memory_space<any>> -> memref<128x128xbf16, #tpu.memory_space<any>>
    %c0_i32_74 = arith.constant 0 : i32
    %c0_i32_75 = arith.constant 0 : i32
    %74 = tpu.memref_slice %arg4[%c1_i32_70, %c0_i32_74, %c0_i32_75] : memref<9x128x128xbf16, #tpu.memory_space<vmem>> -> memref<1x128x128xbf16, #tpu.memory_space<vmem>>
    %75 = tpu.memref_squeeze %74 : memref<1x128x128xbf16, #tpu.memory_space<vmem>> -> memref<128x128xbf16, #tpu.memory_space<vmem>>
    %76 = tpu.memref_slice %arg5[%c1_i32_71] : memref<9x!tpu.dma_semaphore, #tpu.memory_space<semaphore_mem>> -> memref<1x!tpu.dma_semaphore, #tpu.memory_space<semaphore_mem>>
    %77 = tpu.memref_squeeze %76 : memref<1x!tpu.dma_semaphore, #tpu.memory_space<semaphore_mem>> -> memref<!tpu.dma_semaphore, #tpu.memory_space<semaphore_mem>>
    tpu.wait_dma2 semaphore(%77 : memref<!tpu.dma_semaphore, #tpu.memory_space<semaphore_mem>>) src(%73 : memref<128x128xbf16, #tpu.memory_space<any>>) dst(%75 : memref<128x128xbf16, #tpu.memory_space<vmem>>)
    %78 = arith.truncf %70 : vector<8x128xf32> to vector<8x128xbf16>
    %c1_76 = arith.constant 1 : index
    %c0_77 = arith.constant 0 : index
    %c0_78 = arith.constant 0 : index
    %79 = vector.load %arg4[%c1_76, %c0_77, %c0_78] : memref<9x128x128xbf16, #tpu.memory_space<vmem>>, vector<1x128x128xbf16>
    %80 = vector.shape_cast %79 : vector<1x128x128xbf16> to vector<128x128xbf16>
    %cst_79 = arith.constant dense<0.000000e+00> : vector<8x128xf32>
    %81 = tpu.matmul %78, %80, %cst_79 {dimension_numbers = #tpu.dot_dimension_numbers<[1], [0], [0], [1], [0, 0, 1, 1], [], []>} : vector<8x128xbf16>, vector<128x128xbf16>, vector<8x128xf32> -> vector<8x128xf32>
    %82 = vector.broadcast %71 : vector<1x128xf32> to vector<8x128xf32>
    %83 = arith.addf %81, %82 : vector<8x128xf32>
    %cst_80 = arith.constant 0.000000e+00 : f32
    %84 = vector.broadcast %cst_80 : f32 to vector<8x128xf32>
    %85 = arith.maximumf %83, %84 : vector<8x128xf32>
    %cst_81 = arith.constant dense<0.000000e+00> : vector<128xf32>
    %86 = vector.multi_reduction <add>, %85, %cst_81 [0] : vector<8x128xf32> to vector<128xf32>
    %87 = vector.shape_cast %86 : vector<128xf32> to vector<1x128xf32>
    %cst_82 = arith.constant 1.250000e-01 : f32
    %88 = vector.broadcast %cst_82 : f32 to vector<1x128xf32>
    %89 = arith.mulf %87, %88 : vector<1x128xf32>
    %90 = arith.mulf %85, %85 : vector<8x128xf32>
    %cst_83 = arith.constant dense<0.000000e+00> : vector<128xf32>
    %91 = vector.multi_reduction <add>, %90, %cst_83 [0] : vector<8x128xf32> to vector<128xf32>
    %92 = vector.shape_cast %91 : vector<128xf32> to vector<1x128xf32>
    %cst_84 = arith.constant 1.250000e-01 : f32
    %93 = vector.broadcast %cst_84 : f32 to vector<1x128xf32>
    %94 = arith.mulf %92, %93 : vector<1x128xf32>
    %95 = arith.mulf %89, %89 : vector<1x128xf32>
    %96 = arith.subf %94, %95 : vector<1x128xf32>
    %97 = vector.broadcast %89 : vector<1x128xf32> to vector<8x128xf32>
    %98 = arith.subf %85, %97 : vector<8x128xf32>
    %c2 = arith.constant 2 : index
    %c0_85 = arith.constant 0 : index
    %99 = vector.load %arg2[%c2, %c0_85] : memref<14x128xf32, #tpu.memory_space<vmem>>, vector<1x128xf32>
    %cst_86 = arith.constant 9.99999974E-6 : f32
    %100 = vector.broadcast %cst_86 : f32 to vector<1x128xf32>
    %101 = arith.addf %96, %100 : vector<1x128xf32>
    %102 = math.rsqrt %101 : vector<1x128xf32>
    %103 = arith.mulf %99, %102 : vector<1x128xf32>
    %104 = vector.broadcast %103 : vector<1x128xf32> to vector<8x128xf32>
    %105 = arith.mulf %98, %104 : vector<8x128xf32>
    %c3 = arith.constant 3 : index
    %c0_87 = arith.constant 0 : index
    %106 = vector.load %arg2[%c3, %c0_87] : memref<14x128xf32, #tpu.memory_space<vmem>>, vector<1x128xf32>
    %c2_i32_88 = arith.constant 2 : i32
    %c2_i32_89 = arith.constant 2 : i32
    %c2_i32_90 = arith.constant 2 : i32
    %c0_i32_91 = arith.constant 0 : i32
    %c0_i32_92 = arith.constant 0 : i32
    %107 = tpu.memref_slice %arg1[%c2_i32_88, %c0_i32_91, %c0_i32_92] : memref<9x128x128xbf16, #tpu.memory_space<any>> -> memref<1x128x128xbf16, #tpu.memory_space<any>>
    %108 = tpu.memref_squeeze %107 : memref<1x128x128xbf16, #tpu.memory_space<any>> -> memref<128x128xbf16, #tpu.memory_space<any>>
    %c0_i32_93 = arith.constant 0 : i32
    %c0_i32_94 = arith.constant 0 : i32
    %109 = tpu.memref_slice %arg4[%c2_i32_89, %c0_i32_93, %c0_i32_94] : memref<9x128x128xbf16, #tpu.memory_space<vmem>> -> memref<1x128x128xbf16, #tpu.memory_space<vmem>>
    %110 = tpu.memref_squeeze %109 : memref<1x128x128xbf16, #tpu.memory_space<vmem>> -> memref<128x128xbf16, #tpu.memory_space<vmem>>
    %111 = tpu.memref_slice %arg5[%c2_i32_90] : memref<9x!tpu.dma_semaphore, #tpu.memory_space<semaphore_mem>> -> memref<1x!tpu.dma_semaphore, #tpu.memory_space<semaphore_mem>>
    %112 = tpu.memref_squeeze %111 : memref<1x!tpu.dma_semaphore, #tpu.memory_space<semaphore_mem>> -> memref<!tpu.dma_semaphore, #tpu.memory_space<semaphore_mem>>
    tpu.wait_dma2 semaphore(%112 : memref<!tpu.dma_semaphore, #tpu.memory_space<semaphore_mem>>) src(%108 : memref<128x128xbf16, #tpu.memory_space<any>>) dst(%110 : memref<128x128xbf16, #tpu.memory_space<vmem>>)
    %113 = arith.truncf %105 : vector<8x128xf32> to vector<8x128xbf16>
    %c2_95 = arith.constant 2 : index
    %c0_96 = arith.constant 0 : index
    %c0_97 = arith.constant 0 : index
    %114 = vector.load %arg4[%c2_95, %c0_96, %c0_97] : memref<9x128x128xbf16, #tpu.memory_space<vmem>>, vector<1x128x128xbf16>
    %115 = vector.shape_cast %114 : vector<1x128x128xbf16> to vector<128x128xbf16>
    %cst_98 = arith.constant dense<0.000000e+00> : vector<8x128xf32>
    %116 = tpu.matmul %113, %115, %cst_98 {dimension_numbers = #tpu.dot_dimension_numbers<[1], [0], [0], [1], [0, 0, 1, 1], [], []>} : vector<8x128xbf16>, vector<128x128xbf16>, vector<8x128xf32> -> vector<8x128xf32>
    %117 = vector.broadcast %106 : vector<1x128xf32> to vector<8x128xf32>
    %118 = arith.addf %116, %117 : vector<8x128xf32>
    %119 = arith.addf %118, %70 : vector<8x128xf32>
    %cst_99 = arith.constant 0.000000e+00 : f32
    %120 = vector.broadcast %cst_99 : f32 to vector<8x128xf32>
    %121 = arith.maximumf %119, %120 : vector<8x128xf32>
    %c4 = arith.constant 4 : index
    %c0_100 = arith.constant 0 : index
    %122 = vector.load %arg2[%c4, %c0_100] : memref<14x128xf32, #tpu.memory_space<vmem>>, vector<1x128xf32>
    %c3_i32_101 = arith.constant 3 : i32
    %c3_i32_102 = arith.constant 3 : i32
    %c3_i32_103 = arith.constant 3 : i32
    %c0_i32_104 = arith.constant 0 : i32
    %c0_i32_105 = arith.constant 0 : i32
    %123 = tpu.memref_slice %arg1[%c3_i32_101, %c0_i32_104, %c0_i32_105] : memref<9x128x128xbf16, #tpu.memory_space<any>> -> memref<1x128x128xbf16, #tpu.memory_space<any>>
    %124 = tpu.memref_squeeze %123 : memref<1x128x128xbf16, #tpu.memory_space<any>> -> memref<128x128xbf16, #tpu.memory_space<any>>
    %c0_i32_106 = arith.constant 0 : i32
    %c0_i32_107 = arith.constant 0 : i32
    %125 = tpu.memref_slice %arg4[%c3_i32_102, %c0_i32_106, %c0_i32_107] : memref<9x128x128xbf16, #tpu.memory_space<vmem>> -> memref<1x128x128xbf16, #tpu.memory_space<vmem>>
    %126 = tpu.memref_squeeze %125 : memref<1x128x128xbf16, #tpu.memory_space<vmem>> -> memref<128x128xbf16, #tpu.memory_space<vmem>>
    %127 = tpu.memref_slice %arg5[%c3_i32_103] : memref<9x!tpu.dma_semaphore, #tpu.memory_space<semaphore_mem>> -> memref<1x!tpu.dma_semaphore, #tpu.memory_space<semaphore_mem>>
    %128 = tpu.memref_squeeze %127 : memref<1x!tpu.dma_semaphore, #tpu.memory_space<semaphore_mem>> -> memref<!tpu.dma_semaphore, #tpu.memory_space<semaphore_mem>>
    tpu.wait_dma2 semaphore(%128 : memref<!tpu.dma_semaphore, #tpu.memory_space<semaphore_mem>>) src(%124 : memref<128x128xbf16, #tpu.memory_space<any>>) dst(%126 : memref<128x128xbf16, #tpu.memory_space<vmem>>)
    %129 = arith.truncf %121 : vector<8x128xf32> to vector<8x128xbf16>
    %c3_108 = arith.constant 3 : index
    %c0_109 = arith.constant 0 : index
    %c0_110 = arith.constant 0 : index
    %130 = vector.load %arg4[%c3_108, %c0_109, %c0_110] : memref<9x128x128xbf16, #tpu.memory_space<vmem>>, vector<1x128x128xbf16>
    %131 = vector.shape_cast %130 : vector<1x128x128xbf16> to vector<128x128xbf16>
    %cst_111 = arith.constant dense<0.000000e+00> : vector<8x128xf32>
    %132 = tpu.matmul %129, %131, %cst_111 {dimension_numbers = #tpu.dot_dimension_numbers<[1], [0], [0], [1], [0, 0, 1, 1], [], []>} : vector<8x128xbf16>, vector<128x128xbf16>, vector<8x128xf32> -> vector<8x128xf32>
    %133 = vector.broadcast %122 : vector<1x128xf32> to vector<8x128xf32>
    %134 = arith.addf %132, %133 : vector<8x128xf32>
    %cst_112 = arith.constant 0.00999999977 : f32
    %135 = vector.broadcast %cst_112 : f32 to vector<8x128xf32>
    %136 = arith.mulf %135, %134 : vector<8x128xf32>
    %137 = arith.maximumf %134, %136 : vector<8x128xf32>
    %c5 = arith.constant 5 : index
    %c0_113 = arith.constant 0 : index
    %138 = vector.load %arg2[%c5, %c0_113] : memref<14x128xf32, #tpu.memory_space<vmem>>, vector<1x128xf32>
    %c4_i32_114 = arith.constant 4 : i32
    %c4_i32_115 = arith.constant 4 : i32
    %c4_i32_116 = arith.constant 4 : i32
    %c0_i32_117 = arith.constant 0 : i32
    %c0_i32_118 = arith.constant 0 : i32
    %139 = tpu.memref_slice %arg1[%c4_i32_114, %c0_i32_117, %c0_i32_118] : memref<9x128x128xbf16, #tpu.memory_space<any>> -> memref<1x128x128xbf16, #tpu.memory_space<any>>
    %140 = tpu.memref_squeeze %139 : memref<1x128x128xbf16, #tpu.memory_space<any>> -> memref<128x128xbf16, #tpu.memory_space<any>>
    %c0_i32_119 = arith.constant 0 : i32
    %c0_i32_120 = arith.constant 0 : i32
    %141 = tpu.memref_slice %arg4[%c4_i32_115, %c0_i32_119, %c0_i32_120] : memref<9x128x128xbf16, #tpu.memory_space<vmem>> -> memref<1x128x128xbf16, #tpu.memory_space<vmem>>
    %142 = tpu.memref_squeeze %141 : memref<1x128x128xbf16, #tpu.memory_space<vmem>> -> memref<128x128xbf16, #tpu.memory_space<vmem>>
    %143 = tpu.memref_slice %arg5[%c4_i32_116] : memref<9x!tpu.dma_semaphore, #tpu.memory_space<semaphore_mem>> -> memref<1x!tpu.dma_semaphore, #tpu.memory_space<semaphore_mem>>
    %144 = tpu.memref_squeeze %143 : memref<1x!tpu.dma_semaphore, #tpu.memory_space<semaphore_mem>> -> memref<!tpu.dma_semaphore, #tpu.memory_space<semaphore_mem>>
    tpu.wait_dma2 semaphore(%144 : memref<!tpu.dma_semaphore, #tpu.memory_space<semaphore_mem>>) src(%140 : memref<128x128xbf16, #tpu.memory_space<any>>) dst(%142 : memref<128x128xbf16, #tpu.memory_space<vmem>>)
    %145 = arith.truncf %137 : vector<8x128xf32> to vector<8x128xbf16>
    %c4_121 = arith.constant 4 : index
    %c0_122 = arith.constant 0 : index
    %c0_123 = arith.constant 0 : index
    %146 = vector.load %arg4[%c4_121, %c0_122, %c0_123] : memref<9x128x128xbf16, #tpu.memory_space<vmem>>, vector<1x128x128xbf16>
    %147 = vector.shape_cast %146 : vector<1x128x128xbf16> to vector<128x128xbf16>
    %cst_124 = arith.constant dense<0.000000e+00> : vector<8x128xf32>
    %148 = tpu.matmul %145, %147, %cst_124 {dimension_numbers = #tpu.dot_dimension_numbers<[1], [0], [0], [1], [0, 0, 1, 1], [], []>} : vector<8x128xbf16>, vector<128x128xbf16>, vector<8x128xf32> -> vector<8x128xf32>
    %149 = vector.broadcast %138 : vector<1x128xf32> to vector<8x128xf32>
    %150 = arith.addf %148, %149 : vector<8x128xf32>
    %cst_125 = arith.constant 0.00999999977 : f32
    %151 = vector.broadcast %cst_125 : f32 to vector<8x128xf32>
    %152 = arith.mulf %151, %150 : vector<8x128xf32>
    %153 = arith.maximumf %150, %152 : vector<8x128xf32>
    %c6 = arith.constant 6 : index
    %c0_126 = arith.constant 0 : index
    %154 = vector.load %arg2[%c6, %c0_126] : memref<14x128xf32, #tpu.memory_space<vmem>>, vector<1x128xf32>
    %c5_i32_127 = arith.constant 5 : i32
    %c5_i32_128 = arith.constant 5 : i32
    %c5_i32_129 = arith.constant 5 : i32
    %c0_i32_130 = arith.constant 0 : i32
    %c0_i32_131 = arith.constant 0 : i32
    %155 = tpu.memref_slice %arg1[%c5_i32_127, %c0_i32_130, %c0_i32_131] : memref<9x128x128xbf16, #tpu.memory_space<any>> -> memref<1x128x128xbf16, #tpu.memory_space<any>>
    %156 = tpu.memref_squeeze %155 : memref<1x128x128xbf16, #tpu.memory_space<any>> -> memref<128x128xbf16, #tpu.memory_space<any>>
    %c0_i32_132 = arith.constant 0 : i32
    %c0_i32_133 = arith.constant 0 : i32
    %157 = tpu.memref_slice %arg4[%c5_i32_128, %c0_i32_132, %c0_i32_133] : memref<9x128x128xbf16, #tpu.memory_space<vmem>> -> memref<1x128x128xbf16, #tpu.memory_space<vmem>>
    %158 = tpu.memref_squeeze %157 : memref<1x128x128xbf16, #tpu.memory_space<vmem>> -> memref<128x128xbf16, #tpu.memory_space<vmem>>
    %159 = tpu.memref_slice %arg5[%c5_i32_129] : memref<9x!tpu.dma_semaphore, #tpu.memory_space<semaphore_mem>> -> memref<1x!tpu.dma_semaphore, #tpu.memory_space<semaphore_mem>>
    %160 = tpu.memref_squeeze %159 : memref<1x!tpu.dma_semaphore, #tpu.memory_space<semaphore_mem>> -> memref<!tpu.dma_semaphore, #tpu.memory_space<semaphore_mem>>
    tpu.wait_dma2 semaphore(%160 : memref<!tpu.dma_semaphore, #tpu.memory_space<semaphore_mem>>) src(%156 : memref<128x128xbf16, #tpu.memory_space<any>>) dst(%158 : memref<128x128xbf16, #tpu.memory_space<vmem>>)
    %161 = arith.truncf %153 : vector<8x128xf32> to vector<8x128xbf16>
    %c5_134 = arith.constant 5 : index
    %c0_135 = arith.constant 0 : index
    %c0_136 = arith.constant 0 : index
    %162 = vector.load %arg4[%c5_134, %c0_135, %c0_136] : memref<9x128x128xbf16, #tpu.memory_space<vmem>>, vector<1x128x128xbf16>
    %163 = vector.shape_cast %162 : vector<1x128x128xbf16> to vector<128x128xbf16>
    %cst_137 = arith.constant dense<0.000000e+00> : vector<8x128xf32>
    %164 = tpu.matmul %161, %163, %cst_137 {dimension_numbers = #tpu.dot_dimension_numbers<[1], [0], [0], [1], [0, 0, 1, 1], [], []>} : vector<8x128xbf16>, vector<128x128xbf16>, vector<8x128xf32> -> vector<8x128xf32>
    %165 = vector.broadcast %154 : vector<1x128xf32> to vector<8x128xf32>
    %166 = arith.addf %164, %165 : vector<8x128xf32>
    %cst_138 = arith.constant 0.000000e+00 : f32
    %167 = vector.broadcast %cst_138 : f32 to vector<8x128xf32>
    %168 = arith.maximumf %166, %167 : vector<8x128xf32>
    %cst_139 = arith.constant dense<0.000000e+00> : vector<128xf32>
    %169 = vector.multi_reduction <add>, %168, %cst_139 [0] : vector<8x128xf32> to vector<128xf32>
    %170 = vector.shape_cast %169 : vector<128xf32> to vector<1x128xf32>
    %cst_140 = arith.constant 1.250000e-01 : f32
    %171 = vector.broadcast %cst_140 : f32 to vector<1x128xf32>
    %172 = arith.mulf %170, %171 : vector<1x128xf32>
    %173 = arith.mulf %168, %168 : vector<8x128xf32>
    %cst_141 = arith.constant dense<0.000000e+00> : vector<128xf32>
    %174 = vector.multi_reduction <add>, %173, %cst_141 [0] : vector<8x128xf32> to vector<128xf32>
    %175 = vector.shape_cast %174 : vector<128xf32> to vector<1x128xf32>
    %cst_142 = arith.constant 1.250000e-01 : f32
    %176 = vector.broadcast %cst_142 : f32 to vector<1x128xf32>
    %177 = arith.mulf %175, %176 : vector<1x128xf32>
    %178 = arith.mulf %172, %172 : vector<1x128xf32>
    %179 = arith.subf %177, %178 : vector<1x128xf32>
    %180 = vector.broadcast %172 : vector<1x128xf32> to vector<8x128xf32>
    %181 = arith.subf %168, %180 : vector<8x128xf32>
    %c7 = arith.constant 7 : index
    %c0_143 = arith.constant 0 : index
    %182 = vector.load %arg2[%c7, %c0_143] : memref<14x128xf32, #tpu.memory_space<vmem>>, vector<1x128xf32>
    %cst_144 = arith.constant 9.99999974E-6 : f32
    %183 = vector.broadcast %cst_144 : f32 to vector<1x128xf32>
    %184 = arith.addf %179, %183 : vector<1x128xf32>
    %185 = math.rsqrt %184 : vector<1x128xf32>
    %186 = arith.mulf %182, %185 : vector<1x128xf32>
    %187 = vector.broadcast %186 : vector<1x128xf32> to vector<8x128xf32>
    %188 = arith.mulf %181, %187 : vector<8x128xf32>
    %c8 = arith.constant 8 : index
    %c0_145 = arith.constant 0 : index
    %189 = vector.load %arg2[%c8, %c0_145] : memref<14x128xf32, #tpu.memory_space<vmem>>, vector<1x128xf32>
    %c6_i32_146 = arith.constant 6 : i32
    %c6_i32_147 = arith.constant 6 : i32
    %c6_i32_148 = arith.constant 6 : i32
    %c0_i32_149 = arith.constant 0 : i32
    %c0_i32_150 = arith.constant 0 : i32
    %190 = tpu.memref_slice %arg1[%c6_i32_146, %c0_i32_149, %c0_i32_150] : memref<9x128x128xbf16, #tpu.memory_space<any>> -> memref<1x128x128xbf16, #tpu.memory_space<any>>
    %191 = tpu.memref_squeeze %190 : memref<1x128x128xbf16, #tpu.memory_space<any>> -> memref<128x128xbf16, #tpu.memory_space<any>>
    %c0_i32_151 = arith.constant 0 : i32
    %c0_i32_152 = arith.constant 0 : i32
    %192 = tpu.memref_slice %arg4[%c6_i32_147, %c0_i32_151, %c0_i32_152] : memref<9x128x128xbf16, #tpu.memory_space<vmem>> -> memref<1x128x128xbf16, #tpu.memory_space<vmem>>
    %193 = tpu.memref_squeeze %192 : memref<1x128x128xbf16, #tpu.memory_space<vmem>> -> memref<128x128xbf16, #tpu.memory_space<vmem>>
    %194 = tpu.memref_slice %arg5[%c6_i32_148] : memref<9x!tpu.dma_semaphore, #tpu.memory_space<semaphore_mem>> -> memref<1x!tpu.dma_semaphore, #tpu.memory_space<semaphore_mem>>
    %195 = tpu.memref_squeeze %194 : memref<1x!tpu.dma_semaphore, #tpu.memory_space<semaphore_mem>> -> memref<!tpu.dma_semaphore, #tpu.memory_space<semaphore_mem>>
    tpu.wait_dma2 semaphore(%195 : memref<!tpu.dma_semaphore, #tpu.memory_space<semaphore_mem>>) src(%191 : memref<128x128xbf16, #tpu.memory_space<any>>) dst(%193 : memref<128x128xbf16, #tpu.memory_space<vmem>>)
    %196 = arith.truncf %188 : vector<8x128xf32> to vector<8x128xbf16>
    %c6_153 = arith.constant 6 : index
    %c0_154 = arith.constant 0 : index
    %c0_155 = arith.constant 0 : index
    %197 = vector.load %arg4[%c6_153, %c0_154, %c0_155] : memref<9x128x128xbf16, #tpu.memory_space<vmem>>, vector<1x128x128xbf16>
    %198 = vector.shape_cast %197 : vector<1x128x128xbf16> to vector<128x128xbf16>
    %cst_156 = arith.constant dense<0.000000e+00> : vector<8x128xf32>
    %199 = tpu.matmul %196, %198, %cst_156 {dimension_numbers = #tpu.dot_dimension_numbers<[1], [0], [0], [1], [0, 0, 1, 1], [], []>} : vector<8x128xbf16>, vector<128x128xbf16>, vector<8x128xf32> -> vector<8x128xf32>
    %200 = vector.broadcast %189 : vector<1x128xf32> to vector<8x128xf32>
    %201 = arith.addf %199, %200 : vector<8x128xf32>
    %202 = arith.addf %201, %153 : vector<8x128xf32>
    %cst_157 = arith.constant 0.000000e+00 : f32
    %203 = vector.broadcast %cst_157 : f32 to vector<8x128xf32>
    %204 = arith.maximumf %202, %203 : vector<8x128xf32>
    %c9 = arith.constant 9 : index
    %c0_158 = arith.constant 0 : index
    %205 = vector.load %arg2[%c9, %c0_158] : memref<14x128xf32, #tpu.memory_space<vmem>>, vector<1x128xf32>
    %c7_i32_159 = arith.constant 7 : i32
    %c7_i32_160 = arith.constant 7 : i32
    %c7_i32_161 = arith.constant 7 : i32
    %c0_i32_162 = arith.constant 0 : i32
    %c0_i32_163 = arith.constant 0 : i32
    %206 = tpu.memref_slice %arg1[%c7_i32_159, %c0_i32_162, %c0_i32_163] : memref<9x128x128xbf16, #tpu.memory_space<any>> -> memref<1x128x128xbf16, #tpu.memory_space<any>>
    %207 = tpu.memref_squeeze %206 : memref<1x128x128xbf16, #tpu.memory_space<any>> -> memref<128x128xbf16, #tpu.memory_space<any>>
    %c0_i32_164 = arith.constant 0 : i32
    %c0_i32_165 = arith.constant 0 : i32
    %208 = tpu.memref_slice %arg4[%c7_i32_160, %c0_i32_164, %c0_i32_165] : memref<9x128x128xbf16, #tpu.memory_space<vmem>> -> memref<1x128x128xbf16, #tpu.memory_space<vmem>>
    %209 = tpu.memref_squeeze %208 : memref<1x128x128xbf16, #tpu.memory_space<vmem>> -> memref<128x128xbf16, #tpu.memory_space<vmem>>
    %210 = tpu.memref_slice %arg5[%c7_i32_161] : memref<9x!tpu.dma_semaphore, #tpu.memory_space<semaphore_mem>> -> memref<1x!tpu.dma_semaphore, #tpu.memory_space<semaphore_mem>>
    %211 = tpu.memref_squeeze %210 : memref<1x!tpu.dma_semaphore, #tpu.memory_space<semaphore_mem>> -> memref<!tpu.dma_semaphore, #tpu.memory_space<semaphore_mem>>
    tpu.wait_dma2 semaphore(%211 : memref<!tpu.dma_semaphore, #tpu.memory_space<semaphore_mem>>) src(%207 : memref<128x128xbf16, #tpu.memory_space<any>>) dst(%209 : memref<128x128xbf16, #tpu.memory_space<vmem>>)
    %212 = arith.truncf %204 : vector<8x128xf32> to vector<8x128xbf16>
    %c7_166 = arith.constant 7 : index
    %c0_167 = arith.constant 0 : index
    %c0_168 = arith.constant 0 : index
    %213 = vector.load %arg4[%c7_166, %c0_167, %c0_168] : memref<9x128x128xbf16, #tpu.memory_space<vmem>>, vector<1x128x128xbf16>
    %214 = vector.shape_cast %213 : vector<1x128x128xbf16> to vector<128x128xbf16>
    %cst_169 = arith.constant dense<0.000000e+00> : vector<8x128xf32>
    %215 = tpu.matmul %212, %214, %cst_169 {dimension_numbers = #tpu.dot_dimension_numbers<[1], [0], [0], [1], [0, 0, 1, 1], [], []>} : vector<8x128xbf16>, vector<128x128xbf16>, vector<8x128xf32> -> vector<8x128xf32>
    %216 = vector.broadcast %205 : vector<1x128xf32> to vector<8x128xf32>
    %217 = arith.addf %215, %216 : vector<8x128xf32>
    %cst_170 = arith.constant 0.000000e+00 : f32
    %218 = vector.broadcast %cst_170 : f32 to vector<8x128xf32>
    %219 = arith.maximumf %217, %218 : vector<8x128xf32>
    %cst_171 = arith.constant dense<0.000000e+00> : vector<128xf32>
    %220 = vector.multi_reduction <add>, %219, %cst_171 [0] : vector<8x128xf32> to vector<128xf32>
    %221 = vector.shape_cast %220 : vector<128xf32> to vector<1x128xf32>
    %cst_172 = arith.constant 1.250000e-01 : f32
    %222 = vector.broadcast %cst_172 : f32 to vector<1x128xf32>
    %223 = arith.mulf %221, %222 : vector<1x128xf32>
    %224 = arith.mulf %219, %219 : vector<8x128xf32>
    %cst_173 = arith.constant dense<0.000000e+00> : vector<128xf32>
    %225 = vector.multi_reduction <add>, %224, %cst_173 [0] : vector<8x128xf32> to vector<128xf32>
    %226 = vector.shape_cast %225 : vector<128xf32> to vector<1x128xf32>
    %cst_174 = arith.constant 1.250000e-01 : f32
    %227 = vector.broadcast %cst_174 : f32 to vector<1x128xf32>
    %228 = arith.mulf %226, %227 : vector<1x128xf32>
    %229 = arith.mulf %223, %223 : vector<1x128xf32>
    %230 = arith.subf %228, %229 : vector<1x128xf32>
    %231 = vector.broadcast %223 : vector<1x128xf32> to vector<8x128xf32>
    %232 = arith.subf %219, %231 : vector<8x128xf32>
    %c10 = arith.constant 10 : index
    %c0_175 = arith.constant 0 : index
    %233 = vector.load %arg2[%c10, %c0_175] : memref<14x128xf32, #tpu.memory_space<vmem>>, vector<1x128xf32>
    %cst_176 = arith.constant 9.99999974E-6 : f32
    %234 = vector.broadcast %cst_176 : f32 to vector<1x128xf32>
    %235 = arith.addf %230, %234 : vector<1x128xf32>
    %236 = math.rsqrt %235 : vector<1x128xf32>
    %237 = arith.mulf %233, %236 : vector<1x128xf32>
    %238 = vector.broadcast %237 : vector<1x128xf32> to vector<8x128xf32>
    %239 = arith.mulf %232, %238 : vector<8x128xf32>
    %c11 = arith.constant 11 : index
    %c0_177 = arith.constant 0 : index
    %240 = vector.load %arg2[%c11, %c0_177] : memref<14x128xf32, #tpu.memory_space<vmem>>, vector<1x128xf32>
    %c8_i32_178 = arith.constant 8 : i32
    %c8_i32_179 = arith.constant 8 : i32
    %c8_i32_180 = arith.constant 8 : i32
    %c0_i32_181 = arith.constant 0 : i32
    %c0_i32_182 = arith.constant 0 : i32
    %241 = tpu.memref_slice %arg1[%c8_i32_178, %c0_i32_181, %c0_i32_182] : memref<9x128x128xbf16, #tpu.memory_space<any>> -> memref<1x128x128xbf16, #tpu.memory_space<any>>
    %242 = tpu.memref_squeeze %241 : memref<1x128x128xbf16, #tpu.memory_space<any>> -> memref<128x128xbf16, #tpu.memory_space<any>>
    %c0_i32_183 = arith.constant 0 : i32
    %c0_i32_184 = arith.constant 0 : i32
    %243 = tpu.memref_slice %arg4[%c8_i32_179, %c0_i32_183, %c0_i32_184] : memref<9x128x128xbf16, #tpu.memory_space<vmem>> -> memref<1x128x128xbf16, #tpu.memory_space<vmem>>
    %244 = tpu.memref_squeeze %243 : memref<1x128x128xbf16, #tpu.memory_space<vmem>> -> memref<128x128xbf16, #tpu.memory_space<vmem>>
    %245 = tpu.memref_slice %arg5[%c8_i32_180] : memref<9x!tpu.dma_semaphore, #tpu.memory_space<semaphore_mem>> -> memref<1x!tpu.dma_semaphore, #tpu.memory_space<semaphore_mem>>
    %246 = tpu.memref_squeeze %245 : memref<1x!tpu.dma_semaphore, #tpu.memory_space<semaphore_mem>> -> memref<!tpu.dma_semaphore, #tpu.memory_space<semaphore_mem>>
    tpu.wait_dma2 semaphore(%246 : memref<!tpu.dma_semaphore, #tpu.memory_space<semaphore_mem>>) src(%242 : memref<128x128xbf16, #tpu.memory_space<any>>) dst(%244 : memref<128x128xbf16, #tpu.memory_space<vmem>>)
    %247 = arith.truncf %239 : vector<8x128xf32> to vector<8x128xbf16>
    %c8_185 = arith.constant 8 : index
    %c0_186 = arith.constant 0 : index
    %c0_187 = arith.constant 0 : index
    %248 = vector.load %arg4[%c8_185, %c0_186, %c0_187] : memref<9x128x128xbf16, #tpu.memory_space<vmem>>, vector<1x128x128xbf16>
    %249 = vector.shape_cast %248 : vector<1x128x128xbf16> to vector<128x128xbf16>
    %cst_188 = arith.constant dense<0.000000e+00> : vector<8x128xf32>
    %250 = tpu.matmul %247, %249, %cst_188 {dimension_numbers = #tpu.dot_dimension_numbers<[1], [0], [0], [1], [0, 0, 1, 1], [], []>} : vector<8x128xbf16>, vector<128x128xbf16>, vector<8x128xf32> -> vector<8x128xf32>
    %251 = vector.broadcast %240 : vector<1x128xf32> to vector<8x128xf32>
    %252 = arith.addf %250, %251 : vector<8x128xf32>
    %253 = arith.addf %252, %204 : vector<8x128xf32>
    %cst_189 = arith.constant 0.000000e+00 : f32
    %254 = vector.broadcast %cst_189 : f32 to vector<8x128xf32>
    %255 = arith.maximumf %253, %254 : vector<8x128xf32>
    %c12 = arith.constant 12 : index
    %c0_190 = arith.constant 0 : index
    %256 = vector.load %arg2[%c12, %c0_190] : memref<14x128xf32, #tpu.memory_space<vmem>>, vector<1x128xf32>
    %257 = vector.broadcast %256 : vector<1x128xf32> to vector<8x128xf32>
    %258 = arith.mulf %255, %257 : vector<8x128xf32>
    %cst_191 = arith.constant dense<0.000000e+00> : vector<8xf32>
    %259 = vector.multi_reduction <add>, %258, %cst_191 [1] : vector<8x128xf32> to vector<8xf32>
    %260 = vector.shape_cast %259 : vector<8xf32> to vector<8x1xf32>
    %c13 = arith.constant 13 : index
    %c0_192 = arith.constant 0 : index
    %261 = vector.load %arg2[%c13, %c0_192] : memref<14x128xf32, #tpu.memory_space<vmem>>, vector<1x128xf32>
    %262 = vector.extract_strided_slice %261 {offsets = [0, 0], sizes = [1, 1], strides = [1, 1]} : vector<1x128xf32> to vector<1x1xf32>
    %263 = vector.broadcast %262 : vector<1x1xf32> to vector<8x1xf32>
    %264 = arith.addf %260, %263 : vector<8x1xf32>
    %c0_193 = arith.constant 0 : index
    %c0_194 = arith.constant 0 : index
    %265 = vector.load %arg3[%c0_193, %c0_194] : memref<8x1xf32, #tpu.memory_space<vmem>>, vector<8x1xf32>
    tpu.vector_store %arg3[%c0_193, %c0_194], %264 {strides = array<i32>} : memref<8x1xf32, #tpu.memory_space<vmem>>, vector<8x1xf32>,
    return
  }
}

</mosaic_0001>

<llo_original>
// kernel: concat_net.1
$region0: #{concat_net.1}
  #allocation0 [shape = 'u32[]', space=smem, size = 0x4, offset = 0x4, fixed_abs, tag = 'smem constant byte address 0x4 - core index']
  #allocation1 [shape = 'u32[144,128]{1,0:T(1,128)}', space=vmem, size = 0x12000, scoped, tag = 'internal scratch']
  #allocation2 [shape = 'bf16[9,128,128]{2,1,0:T(16,128)(2,1)}', space=vmem, size = 0x48000, scoped, tag = 'scratch operand']
  #allocation3 [shape = 's32[9]{0}', space=sflag, size = 0x24, scoped, tag = 'scratch operand']
  #allocation4 [shape = 's32[]', space=sflag, size = 0x4, offset = 0, fixed_abs, tag = 'sflag constant byte address 0x0 - dummy sync flag']
  #allocation5 [shape = 's32[]', space=sflag, size = 0x4, offset = 0, fixed_abs, tag = 'sflag constant byte address 0x0 - dummy sync flag']
  #allocation6 [shape = 's32[]', space=sflag, size = 0x4, offset = 0, fixed_abs, tag = 'sflag constant byte address 0x0 - dummy sync flag']
  #allocation7 [shape = 's32[]', space=sflag, size = 0x4, offset = 0, fixed_abs, tag = 'sflag constant byte address 0x0 - dummy sync flag']
  #allocation8 [shape = 's32[]', space=sflag, size = 0x4, offset = 0, fixed_abs, tag = 'sflag constant byte address 0x0 - dummy sync flag']
  #allocation9 [shape = 's32[]', space=sflag, size = 0x4, offset = 0, fixed_abs, tag = 'sflag constant byte address 0x0 - dummy sync flag']
  #allocation10 [shape = 's32[]', space=sflag, size = 0x4, offset = 0, fixed_abs, tag = 'sflag constant byte address 0x0 - dummy sync flag']
  #allocation11 [shape = 's32[]', space=sflag, size = 0x4, offset = 0, fixed_abs, tag = 'sflag constant byte address 0x0 - dummy sync flag']
  #allocation12 [shape = 's32[]', space=sflag, size = 0x4, offset = 0, fixed_abs, tag = 'sflag constant byte address 0x0 - dummy sync flag']
  %s0 = inlined_call_operand.vmem [shape: f32[8,128], index: 0, kind: input, shape index: {}]
  %s1 = inlined_call_operand.vmem [shape: bf16[9,128,128], index: 1, kind: input, shape index: {}]
  %s2 = inlined_call_operand.vmem [shape: f32[14,128], index: 2, kind: input, shape index: {}]
  %s3 = inlined_call_operand.vmem [shape: f32[8,1], index: 3, kind: output, shape index: {}]
  %s4 = sld [smem:[#allocation0]]
  $region324: #{concat_net.1} parent=0
    _
  %s6 = ssub.s32 1, %s4
  %s7 = scalar_select 0, %s6, %s4
  // Predicated region
  $region2: #{concat_net.1} parent=0 // pred_check
    _
  $region3: #{concat_net.1} parent=0 // pred_check_branch
    %9 = sbr.rel (0) target = $region5
  $region4: #{concat_net.1} parent=0 // pred_region
    _
  $region5: #{concat_net.1} parent=0 // pred_fallthru
    _
  // Predicated region
  $region6: #{concat_net.1} parent=0 // pred_check
    _
  $region7: #{concat_net.1} parent=0 // pred_check_branch
    %11 = sbr.rel (0) target = $region9
  $region8: #{concat_net.1} parent=0 // pred_region
    _
  $region9: #{concat_net.1} parent=0 // pred_fallthru
    _
  %p14 = scmp.lt.u32.totalorder 64, 8
  %p15 = pneg %p14
  // Predicated region
  $region10: #{concat_net.1} parent=0 // pred_check
    _
  $region11: #{concat_net.1} parent=0 // pred_check_branch
    %17 = sbr.rel (%p14) target = $region13
  $region12: #{concat_net.1} parent=0 // pred_region
    %s32 = sand.u32 64, 7
    %p33 = scmp.eq.s32.totalorder %s32, 0
    // Predicated region
    $region25: #{concat_net.1} parent=12 // pred_check
      %p34 = pneg %p33
    $region26: #{concat_net.1} parent=12 // pred_check_branch
      %36 = sbr.rel (%p34) target = $region28
    $region27: #{concat_net.1} parent=12 // pred_region
      loop: start=0, step=1, limit=1
      $region29: #{concat_net.1} parent=27 // loop_pre_header
        _
      $region30: #{concat_net.1} parent=27 // loop_header
        %s38 = sphi 0, %s42
        %p39 = scmp.ge.s32.totalorder %s38, 1
        %s43 = sphi %s1, %s1
        %s44 = sphi [#allocation2], [#allocation2]
      $region31: #{concat_net.1} parent=27 // loop_header_branch
        %41 = sbr.rel (%p39) target = $region35
      $region32: #{concat_net.1} parent=27 // loop_body
        %v45 = vld [vmem:[%s43] sm:$0xff]
        %46 = vst [vmem:[%s44] sm:$0xff] %v45
        %v47 = vld [vmem:[%s43 + $0x8] sm:$0xff]
        %48 = vst [vmem:[%s44 + $0x8] sm:$0xff] %v47
        %v49 = vld [vmem:[%s43 + $0x10] sm:$0xff]
        %50 = vst [vmem:[%s44 + $0x10] sm:$0xff] %v49
        %v51 = vld [vmem:[%s43 + $0x18] sm:$0xff]
        %52 = vst [vmem:[%s44 + $0x18] sm:$0xff] %v51
        %v53 = vld [vmem:[%s43 + $0x20] sm:$0xff]
        %54 = vst [vmem:[%s44 + $0x20] sm:$0xff] %v53
        %v55 = vld [vmem:[%s43 + $0x28] sm:$0xff]
        %56 = vst [vmem:[%s44 + $0x28] sm:$0xff] %v55
        %v57 = vld [vmem:[%s43 + $0x30] sm:$0xff]
        %58 = vst [vmem:[%s44 + $0x30] sm:$0xff] %v57
        %v59 = vld [vmem:[%s43 + $0x38] sm:$0xff]
        %60 = vst [vmem:[%s44 + $0x38] sm:$0xff] %v59
      $region33: #{concat_net.1} parent=27 // loop_footer
        %s42 = sadd.s32 1, %s38
      $region34: #{concat_net.1} parent=27 // loop_footer_branch
        %37 = sbr.rel target = $region30
      $region35: #{concat_net.1} parent=27 // loop_exit
        _
    $region28: #{concat_net.1} parent=12 // pred_fallthru
      _
    %p61 = pneg %p33
    // Predicated region
    $region36: #{concat_net.1} parent=12 // pred_check
      _
    $region37: #{concat_net.1} parent=12 // pred_check_branch
      %63 = sbr.rel (%p33) target = $region39
    $region38: #{concat_net.1} parent=12 // pred_region
      %s64 = sand.u32 64, 7
    $region39: #{concat_net.1} parent=12 // pred_fallthru
      _
  $region13: #{concat_net.1} parent=0 // pred_fallthru
    _
  // Predicated region
  $region14: #{concat_net.1} parent=0 // pred_check
    %p18 = pneg %p14
  $region15: #{concat_net.1} parent=0 // pred_check_branch
    %20 = sbr.rel (%p18) target = $region17
  $region16: #{concat_net.1} parent=0 // pred_region
    %s21 = sshllo.u32 0, 64
    loop: start=0, step=1, limit=1
    $region18: #{concat_net.1} parent=16 // loop_pre_header
      _
    $region19: #{concat_net.1} parent=16 // loop_header
      %s23 = sphi 0, %s27
      %p24 = scmp.ge.s32.totalorder %s23, 1
      %s28 = sphi %s1, %s1
      %s29 = sphi [#allocation2], [#allocation2]
    $region20: #{concat_net.1} parent=16 // loop_header_branch
      %26 = sbr.rel (%p24) target = $region24
    $region21: #{concat_net.1} parent=16 // loop_body
      %v30 = vld [vmem:[%s28] sm:%s21]
      %31 = vst [vmem:[%s29] sm:%s21] %v30
    $region22: #{concat_net.1} parent=16 // loop_footer
      %s27 = sadd.s32 1, %s23
    $region23: #{concat_net.1} parent=16 // loop_footer_branch
      %22 = sbr.rel target = $region19
    $region24: #{concat_net.1} parent=16 // loop_exit
      _
  $region17: #{concat_net.1} parent=0 // pred_fallthru
    _
  // Predicated region
  $region40: #{concat_net.1} parent=0 // pred_check
    _
  $region41: #{concat_net.1} parent=0 // pred_check_branch
    %67 = sbr.rel (0) target = $region43
  $region42: #{concat_net.1} parent=0 // pred_region
    %68 = vsyncadd [#allocation3], 1024
  $region43: #{concat_net.1} parent=0 // pred_fallthru
    _
  %s69 = scalar_lea.vmem %s1, 64
  %s70 = scalar_lea.vmem [#allocation2], 64
  %s71 = scalar_lea.sflag [#allocation3], 1
  %p73 = scmp.lt.u32.totalorder 64, 8
  %p74 = pneg %p73
  // Predicated region
  $region44: #{concat_net.1} parent=0 // pred_check
    _
  $region45: #{concat_net.1} parent=0 // pred_check_branch
    %76 = sbr.rel (%p73) target = $region47
  $region46: #{concat_net.1} parent=0 // pred_region
    %s91 = sand.u32 64, 7
    %p92 = scmp.eq.s32.totalorder %s91, 0
    // Predicated region
    $region59: #{concat_net.1} parent=46 // pred_check
      %p93 = pneg %p92
    $region60: #{concat_net.1} parent=46 // pred_check_branch
      %95 = sbr.rel (%p93) target = $region62
    $region61: #{concat_net.1} parent=46 // pred_region
      loop: start=0, step=1, limit=1
      $region63: #{concat_net.1} parent=61 // loop_pre_header
        _
      $region64: #{concat_net.1} parent=61 // loop_header
        %s97 = sphi 0, %s101
        %p98 = scmp.ge.s32.totalorder %s97, 1
        %s102 = sphi %s69, %s69
        %s103 = sphi %s70, %s70
      $region65: #{concat_net.1} parent=61 // loop_header_branch
        %100 = sbr.rel (%p98) target = $region69
      $region66: #{concat_net.1} parent=61 // loop_body
        %v104 = vld [vmem:[%s102] sm:$0xff]
        %105 = vst [vmem:[%s103] sm:$0xff] %v104
        %v106 = vld [vmem:[%s102 + $0x8] sm:$0xff]
        %107 = vst [vmem:[%s103 + $0x8] sm:$0xff] %v106
        %v108 = vld [vmem:[%s102 + $0x10] sm:$0xff]
        %109 = vst [vmem:[%s103 + $0x10] sm:$0xff] %v108
        %v110 = vld [vmem:[%s102 + $0x18] sm:$0xff]
        %111 = vst [vmem:[%s103 + $0x18] sm:$0xff] %v110
        %v112 = vld [vmem:[%s102 + $0x20] sm:$0xff]
        %113 = vst [vmem:[%s103 + $0x20] sm:$0xff] %v112
        %v114 = vld [vmem:[%s102 + $0x28] sm:$0xff]
        %115 = vst [vmem:[%s103 + $0x28] sm:$0xff] %v114
        %v116 = vld [vmem:[%s102 + $0x30] sm:$0xff]
        %117 = vst [vmem:[%s103 + $0x30] sm:$0xff] %v116
        %v118 = vld [vmem:[%s102 + $0x38] sm:$0xff]
        %119 = vst [vmem:[%s103 + $0x38] sm:$0xff] %v118
      $region67: #{concat_net.1} parent=61 // loop_footer
        %s101 = sadd.s32 1, %s97
      $region68: #{concat_net.1} parent=61 // loop_footer_branch
        %96 = sbr.rel target = $region64
      $region69: #{concat_net.1} parent=61 // loop_exit
        _
    $region62: #{concat_net.1} parent=46 // pred_fallthru
      _
    %p120 = pneg %p92
    // Predicated region
    $region70: #{concat_net.1} parent=46 // pred_check
      _
    $region71: #{concat_net.1} parent=46 // pred_check_branch
      %122 = sbr.rel (%p92) target = $region73
    $region72: #{concat_net.1} parent=46 // pred_region
      %s123 = sand.u32 64, 7
    $region73: #{concat_net.1} parent=46 // pred_fallthru
      _
  $region47: #{concat_net.1} parent=0 // pred_fallthru
    _
  // Predicated region
  $region48: #{concat_net.1} parent=0 // pred_check
    %p77 = pneg %p73
  $region49: #{concat_net.1} parent=0 // pred_check_branch
    %79 = sbr.rel (%p77) target = $region51
  $region50: #{concat_net.1} parent=0 // pred_region
    %s80 = sshllo.u32 0, 64
    loop: start=0, step=1, limit=1
    $region52: #{concat_net.1} parent=50 // loop_pre_header
      _
    $region53: #{concat_net.1} parent=50 // loop_header
      %s82 = sphi 0, %s86
      %p83 = scmp.ge.s32.totalorder %s82, 1
      %s87 = sphi %s69, %s69
      %s88 = sphi %s70, %s70
    $region54: #{concat_net.1} parent=50 // loop_header_branch
      %85 = sbr.rel (%p83) target = $region58
    $region55: #{concat_net.1} parent=50 // loop_body
      %v89 = vld [vmem:[%s87] sm:%s80]
      %90 = vst [vmem:[%s88] sm:%s80] %v89
    $region56: #{concat_net.1} parent=50 // loop_footer
      %s86 = sadd.s32 1, %s82
    $region57: #{concat_net.1} parent=50 // loop_footer_branch
      %81 = sbr.rel target = $region53
    $region58: #{concat_net.1} parent=50 // loop_exit
      _
  $region51: #{concat_net.1} parent=0 // pred_fallthru
    _
  // Predicated region
  $region74: #{concat_net.1} parent=0 // pred_check
    _
  $region75: #{concat_net.1} parent=0 // pred_check_branch
    %126 = sbr.rel (0) target = $region77
  $region76: #{concat_net.1} parent=0 // pred_region
    %127 = vsyncadd %s71, 1024
  $region77: #{concat_net.1} parent=0 // pred_fallthru
    _
  %s128 = scalar_lea.vmem %s1, 128
  %s129 = scalar_lea.vmem [#allocation2], 128
  %s130 = scalar_lea.sflag [#allocation3], 2
  %p132 = scmp.lt.u32.totalorder 64, 8
  %p133 = pneg %p132
  // Predicated region
  $region78: #{concat_net.1} parent=0 // pred_check
    _
  $region79: #{concat_net.1} parent=0 // pred_check_branch
    %135 = sbr.rel (%p132) target = $region81
  $region80: #{concat_net.1} parent=0 // pred_region
    %s150 = sand.u32 64, 7
    %p151 = scmp.eq.s32.totalorder %s150, 0
    // Predicated region
    $region93: #{concat_net.1} parent=80 // pred_check
      %p152 = pneg %p151
    $region94: #{concat_net.1} parent=80 // pred_check_branch
      %154 = sbr.rel (%p152) target = $region96
    $region95: #{concat_net.1} parent=80 // pred_region
      loop: start=0, step=1, limit=1
      $region97: #{concat_net.1} parent=95 // loop_pre_header
        _
      $region98: #{concat_net.1} parent=95 // loop_header
        %s156 = sphi 0, %s160
        %p157 = scmp.ge.s32.totalorder %s156, 1
        %s161 = sphi %s128, %s128
        %s162 = sphi %s129, %s129
      $region99: #{concat_net.1} parent=95 // loop_header_branch
        %159 = sbr.rel (%p157) target = $region103
      $region100: #{concat_net.1} parent=95 // loop_body
        %v163 = vld [vmem:[%s161] sm:$0xff]
        %164 = vst [vmem:[%s162] sm:$0xff] %v163
        %v165 = vld [vmem:[%s161 + $0x8] sm:$0xff]
        %166 = vst [vmem:[%s162 + $0x8] sm:$0xff] %v165
        %v167 = vld [vmem:[%s161 + $0x10] sm:$0xff]
        %168 = vst [vmem:[%s162 + $0x10] sm:$0xff] %v167
        %v169 = vld [vmem:[%s161 + $0x18] sm:$0xff]
        %170 = vst [vmem:[%s162 + $0x18] sm:$0xff] %v169
        %v171 = vld [vmem:[%s161 + $0x20] sm:$0xff]
        %172 = vst [vmem:[%s162 + $0x20] sm:$0xff] %v171
        %v173 = vld [vmem:[%s161 + $0x28] sm:$0xff]
        %174 = vst [vmem:[%s162 + $0x28] sm:$0xff] %v173
        %v175 = vld [vmem:[%s161 + $0x30] sm:$0xff]
        %176 = vst [vmem:[%s162 + $0x30] sm:$0xff] %v175
        %v177 = vld [vmem:[%s161 + $0x38] sm:$0xff]
        %178 = vst [vmem:[%s162 + $0x38] sm:$0xff] %v177
      $region101: #{concat_net.1} parent=95 // loop_footer
        %s160 = sadd.s32 1, %s156
      $region102: #{concat_net.1} parent=95 // loop_footer_branch
        %155 = sbr.rel target = $region98
      $region103: #{concat_net.1} parent=95 // loop_exit
        _
    $region96: #{concat_net.1} parent=80 // pred_fallthru
      _
    %p179 = pneg %p151
    // Predicated region
    $region104: #{concat_net.1} parent=80 // pred_check
      _
    $region105: #{concat_net.1} parent=80 // pred_check_branch
      %181 = sbr.rel (%p151) target = $region107
    $region106: #{concat_net.1} parent=80 // pred_region
      %s182 = sand.u32 64, 7
    $region107: #{concat_net.1} parent=80 // pred_fallthru
      _
  $region81: #{concat_net.1} parent=0 // pred_fallthru
    _
  // Predicated region
  $region82: #{concat_net.1} parent=0 // pred_check
    %p136 = pneg %p132
  $region83: #{concat_net.1} parent=0 // pred_check_branch
    %138 = sbr.rel (%p136) target = $region85
  $region84: #{concat_net.1} parent=0 // pred_region
    %s139 = sshllo.u32 0, 64
    loop: start=0, step=1, limit=1
    $region86: #{concat_net.1} parent=84 // loop_pre_header
      _
    $region87: #{concat_net.1} parent=84 // loop_header
      %s141 = sphi 0, %s145
      %p142 = scmp.ge.s32.totalorder %s141, 1
      %s146 = sphi %s128, %s128
      %s147 = sphi %s129, %s129
    $region88: #{concat_net.1} parent=84 // loop_header_branch
      %144 = sbr.rel (%p142) target = $region92
    $region89: #{concat_net.1} parent=84 // loop_body
      %v148 = vld [vmem:[%s146] sm:%s139]
      %149 = vst [vmem:[%s147] sm:%s139] %v148
    $region90: #{concat_net.1} parent=84 // loop_footer
      %s145 = sadd.s32 1, %s141
    $region91: #{concat_net.1} parent=84 // loop_footer_branch
      %140 = sbr.rel target = $region87
    $region92: #{concat_net.1} parent=84 // loop_exit
      _
  $region85: #{concat_net.1} parent=0 // pred_fallthru
    _
  // Predicated region
  $region108: #{concat_net.1} parent=0 // pred_check
    _
  $region109: #{concat_net.1} parent=0 // pred_check_branch
    %185 = sbr.rel (0) target = $region111
  $region110: #{concat_net.1} parent=0 // pred_region
    %186 = vsyncadd %s130, 1024
  $region111: #{concat_net.1} parent=0 // pred_fallthru
    _
  %s187 = scalar_lea.vmem %s1, 192
  %s188 = scalar_lea.vmem [#allocation2], 192
  %s189 = scalar_lea.sflag [#allocation3], 3
  %p191 = scmp.lt.u32.totalorder 64, 8
  %p192 = pneg %p191
  // Predicated region
  $region112: #{concat_net.1} parent=0 // pred_check
    _
  $region113: #{concat_net.1} parent=0 // pred_check_branch
    %194 = sbr.rel (%p191) target = $region115
  $region114: #{concat_net.1} parent=0 // pred_region
    %s209 = sand.u32 64, 7
    %p210 = scmp.eq.s32.totalorder %s209, 0
    // Predicated region
    $region127: #{concat_net.1} parent=114 // pred_check
      %p211 = pneg %p210
    $region128: #{concat_net.1} parent=114 // pred_check_branch
      %213 = sbr.rel (%p211) target = $region130
    $region129: #{concat_net.1} parent=114 // pred_region
      loop: start=0, step=1, limit=1
      $region131: #{concat_net.1} parent=129 // loop_pre_header
        _
      $region132: #{concat_net.1} parent=129 // loop_header
        %s215 = sphi 0, %s219
        %p216 = scmp.ge.s32.totalorder %s215, 1
        %s220 = sphi %s187, %s187
        %s221 = sphi %s188, %s188
      $region133: #{concat_net.1} parent=129 // loop_header_branch
        %218 = sbr.rel (%p216) target = $region137
      $region134: #{concat_net.1} parent=129 // loop_body
        %v222 = vld [vmem:[%s220] sm:$0xff]
        %223 = vst [vmem:[%s221] sm:$0xff] %v222
        %v224 = vld [vmem:[%s220 + $0x8] sm:$0xff]
        %225 = vst [vmem:[%s221 + $0x8] sm:$0xff] %v224
        %v226 = vld [vmem:[%s220 + $0x10] sm:$0xff]
        %227 = vst [vmem:[%s221 + $0x10] sm:$0xff] %v226
        %v228 = vld [vmem:[%s220 + $0x18] sm:$0xff]
        %229 = vst [vmem:[%s221 + $0x18] sm:$0xff] %v228
        %v230 = vld [vmem:[%s220 + $0x20] sm:$0xff]
        %231 = vst [vmem:[%s221 + $0x20] sm:$0xff] %v230
        %v232 = vld [vmem:[%s220 + $0x28] sm:$0xff]
        %233 = vst [vmem:[%s221 + $0x28] sm:$0xff] %v232
        %v234 = vld [vmem:[%s220 + $0x30] sm:$0xff]
        %235 = vst [vmem:[%s221 + $0x30] sm:$0xff] %v234
        %v236 = vld [vmem:[%s220 + $0x38] sm:$0xff]
        %237 = vst [vmem:[%s221 + $0x38] sm:$0xff] %v236
      $region135: #{concat_net.1} parent=129 // loop_footer
        %s219 = sadd.s32 1, %s215
      $region136: #{concat_net.1} parent=129 // loop_footer_branch
        %214 = sbr.rel target = $region132
      $region137: #{concat_net.1} parent=129 // loop_exit
        _
    $region130: #{concat_net.1} parent=114 // pred_fallthru
      _
    %p238 = pneg %p210
    // Predicated region
    $region138: #{concat_net.1} parent=114 // pred_check
      _
    $region139: #{concat_net.1} parent=114 // pred_check_branch
      %240 = sbr.rel (%p210) target = $region141
    $region140: #{concat_net.1} parent=114 // pred_region
      %s241 = sand.u32 64, 7
    $region141: #{concat_net.1} parent=114 // pred_fallthru
      _
  $region115: #{concat_net.1} parent=0 // pred_fallthru
    _
  // Predicated region
  $region116: #{concat_net.1} parent=0 // pred_check
    %p195 = pneg %p191
  $region117: #{concat_net.1} parent=0 // pred_check_branch
    %197 = sbr.rel (%p195) target = $region119
  $region118: #{concat_net.1} parent=0 // pred_region
    %s198 = sshllo.u32 0, 64
    loop: start=0, step=1, limit=1
    $region120: #{concat_net.1} parent=118 // loop_pre_header
      _
    $region121: #{concat_net.1} parent=118 // loop_header
      %s200 = sphi 0, %s204
      %p201 = scmp.ge.s32.totalorder %s200, 1
      %s205 = sphi %s187, %s187
      %s206 = sphi %s188, %s188
    $region122: #{concat_net.1} parent=118 // loop_header_branch
      %203 = sbr.rel (%p201) target = $region126
    $region123: #{concat_net.1} parent=118 // loop_body
      %v207 = vld [vmem:[%s205] sm:%s198]
      %208 = vst [vmem:[%s206] sm:%s198] %v207
    $region124: #{concat_net.1} parent=118 // loop_footer
      %s204 = sadd.s32 1, %s200
    $region125: #{concat_net.1} parent=118 // loop_footer_branch
      %199 = sbr.rel target = $region121
    $region126: #{concat_net.1} parent=118 // loop_exit
      _
  $region119: #{concat_net.1} parent=0 // pred_fallthru
    _
  // Predicated region
  $region142: #{concat_net.1} parent=0 // pred_check
    _
  $region143: #{concat_net.1} parent=0 // pred_check_branch
    %244 = sbr.rel (0) target = $region145
  $region144: #{concat_net.1} parent=0 // pred_region
    %245 = vsyncadd %s189, 1024
  $region145: #{concat_net.1} parent=0 // pred_fallthru
    _
  %s246 = scalar_lea.vmem %s1, 256
  %s247 = scalar_lea.vmem [#allocation2], 256
  %s248 = scalar_lea.sflag [#allocation3], 4
  %p250 = scmp.lt.u32.totalorder 64, 8
  %p251 = pneg %p250
  // Predicated region
  $region146: #{concat_net.1} parent=0 // pred_check
    _
  $region147: #{concat_net.1} parent=0 // pred_check_branch
    %253 = sbr.rel (%p250) target = $region149
  $region148: #{concat_net.1} parent=0 // pred_region
    %s268 = sand.u32 64, 7
    %p269 = scmp.eq.s32.totalorder %s268, 0
    // Predicated region
    $region161: #{concat_net.1} parent=148 // pred_check
      %p270 = pneg %p269
    $region162: #{concat_net.1} parent=148 // pred_check_branch
      %272 = sbr.rel (%p270) target = $region164
    $region163: #{concat_net.1} parent=148 // pred_region
      loop: start=0, step=1, limit=1
      $region165: #{concat_net.1} parent=163 // loop_pre_header
        _
      $region166: #{concat_net.1} parent=163 // loop_header
        %s274 = sphi 0, %s278
        %p275 = scmp.ge.s32.totalorder %s274, 1
        %s279 = sphi %s246, %s246
        %s280 = sphi %s247, %s247
      $region167: #{concat_net.1} parent=163 // loop_header_branch
        %277 = sbr.rel (%p275) target = $region171
      $region168: #{concat_net.1} parent=163 // loop_body
        %v281 = vld [vmem:[%s279] sm:$0xff]
        %282 = vst [vmem:[%s280] sm:$0xff] %v281
        %v283 = vld [vmem:[%s279 + $0x8] sm:$0xff]
        %284 = vst [vmem:[%s280 + $0x8] sm:$0xff] %v283
        %v285 = vld [vmem:[%s279 + $0x10] sm:$0xff]
        %286 = vst [vmem:[%s280 + $0x10] sm:$0xff] %v285
        %v287 = vld [vmem:[%s279 + $0x18] sm:$0xff]
        %288 = vst [vmem:[%s280 + $0x18] sm:$0xff] %v287
        %v289 = vld [vmem:[%s279 + $0x20] sm:$0xff]
        %290 = vst [vmem:[%s280 + $0x20] sm:$0xff] %v289
        %v291 = vld [vmem:[%s279 + $0x28] sm:$0xff]
        %292 = vst [vmem:[%s280 + $0x28] sm:$0xff] %v291
        %v293 = vld [vmem:[%s279 + $0x30] sm:$0xff]
        %294 = vst [vmem:[%s280 + $0x30] sm:$0xff] %v293
        %v295 = vld [vmem:[%s279 + $0x38] sm:$0xff]
        %296 = vst [vmem:[%s280 + $0x38] sm:$0xff] %v295
      $region169: #{concat_net.1} parent=163 // loop_footer
        %s278 = sadd.s32 1, %s274
      $region170: #{concat_net.1} parent=163 // loop_footer_branch
        %273 = sbr.rel target = $region166
      $region171: #{concat_net.1} parent=163 // loop_exit
        _
    $region164: #{concat_net.1} parent=148 // pred_fallthru
      _
    %p297 = pneg %p269
    // Predicated region
    $region172: #{concat_net.1} parent=148 // pred_check
      _
    $region173: #{concat_net.1} parent=148 // pred_check_branch
      %299 = sbr.rel (%p269) target = $region175
    $region174: #{concat_net.1} parent=148 // pred_region
      %s300 = sand.u32 64, 7
    $region175: #{concat_net.1} parent=148 // pred_fallthru
      _
  $region149: #{concat_net.1} parent=0 // pred_fallthru
    _
  // Predicated region
  $region150: #{concat_net.1} parent=0 // pred_check
    %p254 = pneg %p250
  $region151: #{concat_net.1} parent=0 // pred_check_branch
    %256 = sbr.rel (%p254) target = $region153
  $region152: #{concat_net.1} parent=0 // pred_region
    %s257 = sshllo.u32 0, 64
    loop: start=0, step=1, limit=1
    $region154: #{concat_net.1} parent=152 // loop_pre_header
      _
    $region155: #{concat_net.1} parent=152 // loop_header
      %s259 = sphi 0, %s263
      %p260 = scmp.ge.s32.totalorder %s259, 1
      %s264 = sphi %s246, %s246
      %s265 = sphi %s247, %s247
    $region156: #{concat_net.1} parent=152 // loop_header_branch
      %262 = sbr.rel (%p260) target = $region160
    $region157: #{concat_net.1} parent=152 // loop_body
      %v266 = vld [vmem:[%s264] sm:%s257]
      %267 = vst [vmem:[%s265] sm:%s257] %v266
    $region158: #{concat_net.1} parent=152 // loop_footer
      %s263 = sadd.s32 1, %s259
    $region159: #{concat_net.1} parent=152 // loop_footer_branch
      %258 = sbr.rel target = $region155
    $region160: #{concat_net.1} parent=152 // loop_exit
      _
  $region153: #{concat_net.1} parent=0 // pred_fallthru
    _
  // Predicated region
  $region176: #{concat_net.1} parent=0 // pred_check
    _
  $region177: #{concat_net.1} parent=0 // pred_check_branch
    %303 = sbr.rel (0) target = $region179
  $region178: #{concat_net.1} parent=0 // pred_region
    %304 = vsyncadd %s248, 1024
  $region179: #{concat_net.1} parent=0 // pred_fallthru
    _
  %s305 = scalar_lea.vmem %s1, 320
  %s306 = scalar_lea.vmem [#allocation2], 320
  %s307 = scalar_lea.sflag [#allocation3], 5
  %p309 = scmp.lt.u32.totalorder 64, 8
  %p310 = pneg %p309
  // Predicated region
  $region180: #{concat_net.1} parent=0 // pred_check
    _
  $region181: #{concat_net.1} parent=0 // pred_check_branch
    %312 = sbr.rel (%p309) target = $region183
  $region182: #{concat_net.1} parent=0 // pred_region
    %s327 = sand.u32 64, 7
    %p328 = scmp.eq.s32.totalorder %s327, 0
    // Predicated region
    $region195: #{concat_net.1} parent=182 // pred_check
      %p329 = pneg %p328
    $region196: #{concat_net.1} parent=182 // pred_check_branch
      %331 = sbr.rel (%p329) target = $region198
    $region197: #{concat_net.1} parent=182 // pred_region
      loop: start=0, step=1, limit=1
      $region199: #{concat_net.1} parent=197 // loop_pre_header
        _
      $region200: #{concat_net.1} parent=197 // loop_header
        %s333 = sphi 0, %s337
        %p334 = scmp.ge.s32.totalorder %s333, 1
        %s338 = sphi %s305, %s305
        %s339 = sphi %s306, %s306
      $region201: #{concat_net.1} parent=197 // loop_header_branch
        %336 = sbr.rel (%p334) target = $region205
      $region202: #{concat_net.1} parent=197 // loop_body
        %v340 = vld [vmem:[%s338] sm:$0xff]
        %341 = vst [vmem:[%s339] sm:$0xff] %v340
        %v342 = vld [vmem:[%s338 + $0x8] sm:$0xff]
        %343 = vst [vmem:[%s339 + $0x8] sm:$0xff] %v342
        %v344 = vld [vmem:[%s338 + $0x10] sm:$0xff]
        %345 = vst [vmem:[%s339 + $0x10] sm:$0xff] %v344
        %v346 = vld [vmem:[%s338 + $0x18] sm:$0xff]
        %347 = vst [vmem:[%s339 + $0x18] sm:$0xff] %v346
        %v348 = vld [vmem:[%s338 + $0x20] sm:$0xff]
        %349 = vst [vmem:[%s339 + $0x20] sm:$0xff] %v348
        %v350 = vld [vmem:[%s338 + $0x28] sm:$0xff]
        %351 = vst [vmem:[%s339 + $0x28] sm:$0xff] %v350
        %v352 = vld [vmem:[%s338 + $0x30] sm:$0xff]
        %353 = vst [vmem:[%s339 + $0x30] sm:$0xff] %v352
        %v354 = vld [vmem:[%s338 + $0x38] sm:$0xff]
        %355 = vst [vmem:[%s339 + $0x38] sm:$0xff] %v354
      $region203: #{concat_net.1} parent=197 // loop_footer
        %s337 = sadd.s32 1, %s333
      $region204: #{concat_net.1} parent=197 // loop_footer_branch
        %332 = sbr.rel target = $region200
      $region205: #{concat_net.1} parent=197 // loop_exit
        _
    $region198: #{concat_net.1} parent=182 // pred_fallthru
      _
    %p356 = pneg %p328
    // Predicated region
    $region206: #{concat_net.1} parent=182 // pred_check
      _
    $region207: #{concat_net.1} parent=182 // pred_check_branch
      %358 = sbr.rel (%p328) target = $region209
    $region208: #{concat_net.1} parent=182 // pred_region
      %s359 = sand.u32 64, 7
    $region209: #{concat_net.1} parent=182 // pred_fallthru
      _
  $region183: #{concat_net.1} parent=0 // pred_fallthru
    _
  // Predicated region
  $region184: #{concat_net.1} parent=0 // pred_check
    %p313 = pneg %p309
  $region185: #{concat_net.1} parent=0 // pred_check_branch
    %315 = sbr.rel (%p313) target = $region187
  $region186: #{concat_net.1} parent=0 // pred_region
    %s316 = sshllo.u32 0, 64
    loop: start=0, step=1, limit=1
    $region188: #{concat_net.1} parent=186 // loop_pre_header
      _
    $region189: #{concat_net.1} parent=186 // loop_header
      %s318 = sphi 0, %s322
      %p319 = scmp.ge.s32.totalorder %s318, 1
      %s323 = sphi %s305, %s305
      %s324 = sphi %s306, %s306
    $region190: #{concat_net.1} parent=186 // loop_header_branch
      %321 = sbr.rel (%p319) target = $region194
    $region191: #{concat_net.1} parent=186 // loop_body
      %v325 = vld [vmem:[%s323] sm:%s316]
      %326 = vst [vmem:[%s324] sm:%s316] %v325
    $region192: #{concat_net.1} parent=186 // loop_footer
      %s322 = sadd.s32 1, %s318
    $region193: #{concat_net.1} parent=186 // loop_footer_branch
      %317 = sbr.rel target = $region189
    $region194: #{concat_net.1} parent=186 // loop_exit
      _
  $region187: #{concat_net.1} parent=0 // pred_fallthru
    _
  // Predicated region
  $region210: #{concat_net.1} parent=0 // pred_check
    _
  $region211: #{concat_net.1} parent=0 // pred_check_branch
    %362 = sbr.rel (0) target = $region213
  $region212: #{concat_net.1} parent=0 // pred_region
    %363 = vsyncadd %s307, 1024
  $region213: #{concat_net.1} parent=0 // pred_fallthru
    _
  %s364 = scalar_lea.vmem %s1, 384
  %s365 = scalar_lea.vmem [#allocation2], 384
  %s366 = scalar_lea.sflag [#allocation3], 6
  %p368 = scmp.lt.u32.totalorder 64, 8
  %p369 = pneg %p368
  // Predicated region
  $region214: #{concat_net.1} parent=0 // pred_check
    _
  $region215: #{concat_net.1} parent=0 // pred_check_branch
    %371 = sbr.rel (%p368) target = $region217
  $region216: #{concat_net.1} parent=0 // pred_region
    %s386 = sand.u32 64, 7
    %p387 = scmp.eq.s32.totalorder %s386, 0
    // Predicated region
    $region229: #{concat_net.1} parent=216 // pred_check
      %p388 = pneg %p387
    $region230: #{concat_net.1} parent=216 // pred_check_branch
      %390 = sbr.rel (%p388) target = $region232
    $region231: #{concat_net.1} parent=216 // pred_region
      loop: start=0, step=1, limit=1
      $region233: #{concat_net.1} parent=231 // loop_pre_header
        _
      $region234: #{concat_net.1} parent=231 // loop_header
        %s392 = sphi 0, %s396
        %p393 = scmp.ge.s32.totalorder %s392, 1
        %s397 = sphi %s364, %s364
        %s398 = sphi %s365, %s365
      $region235: #{concat_net.1} parent=231 // loop_header_branch
        %395 = sbr.rel (%p393) target = $region239
      $region236: #{concat_net.1} parent=231 // loop_body
        %v399 = vld [vmem:[%s397] sm:$0xff]
        %400 = vst [vmem:[%s398] sm:$0xff] %v399
        %v401 = vld [vmem:[%s397 + $0x8] sm:$0xff]
        %402 = vst [vmem:[%s398 + $0x8] sm:$0xff] %v401
        %v403 = vld [vmem:[%s397 + $0x10] sm:$0xff]
        %404 = vst [vmem:[%s398 + $0x10] sm:$0xff] %v403
        %v405 = vld [vmem:[%s397 + $0x18] sm:$0xff]
        %406 = vst [vmem:[%s398 + $0x18] sm:$0xff] %v405
        %v407 = vld [vmem:[%s397 + $0x20] sm:$0xff]
        %408 = vst [vmem:[%s398 + $0x20] sm:$0xff] %v407
        %v409 = vld [vmem:[%s397 + $0x28] sm:$0xff]
        %410 = vst [vmem:[%s398 + $0x28] sm:$0xff] %v409
        %v411 = vld [vmem:[%s397 + $0x30] sm:$0xff]
        %412 = vst [vmem:[%s398 + $0x30] sm:$0xff] %v411
        %v413 = vld [vmem:[%s397 + $0x38] sm:$0xff]
        %414 = vst [vmem:[%s398 + $0x38] sm:$0xff] %v413
      $region237: #{concat_net.1} parent=231 // loop_footer
        %s396 = sadd.s32 1, %s392
      $region238: #{concat_net.1} parent=231 // loop_footer_branch
        %391 = sbr.rel target = $region234
      $region239: #{concat_net.1} parent=231 // loop_exit
        _
    $region232: #{concat_net.1} parent=216 // pred_fallthru
      _
    %p415 = pneg %p387
    // Predicated region
    $region240: #{concat_net.1} parent=216 // pred_check
      _
    $region241: #{concat_net.1} parent=216 // pred_check_branch
      %417 = sbr.rel (%p387) target = $region243
    $region242: #{concat_net.1} parent=216 // pred_region
      %s418 = sand.u32 64, 7
    $region243: #{concat_net.1} parent=216 // pred_fallthru
      _
  $region217: #{concat_net.1} parent=0 // pred_fallthru
    _
  // Predicated region
  $region218: #{concat_net.1} parent=0 // pred_check
    %p372 = pneg %p368
  $region219: #{concat_net.1} parent=0 // pred_check_branch
    %374 = sbr.rel (%p372) target = $region221
  $region220: #{concat_net.1} parent=0 // pred_region
    %s375 = sshllo.u32 0, 64
    loop: start=0, step=1, limit=1
    $region222: #{concat_net.1} parent=220 // loop_pre_header
      _
    $region223: #{concat_net.1} parent=220 // loop_header
      %s377 = sphi 0, %s381
      %p378 = scmp.ge.s32.totalorder %s377, 1
      %s382 = sphi %s364, %s364
      %s383 = sphi %s365, %s365
    $region224: #{concat_net.1} parent=220 // loop_header_branch
      %380 = sbr.rel (%p378) target = $region228
    $region225: #{concat_net.1} parent=220 // loop_body
      %v384 = vld [vmem:[%s382] sm:%s375]
      %385 = vst [vmem:[%s383] sm:%s375] %v384
    $region226: #{concat_net.1} parent=220 // loop_footer
      %s381 = sadd.s32 1, %s377
    $region227: #{concat_net.1} parent=220 // loop_footer_branch
      %376 = sbr.rel target = $region223
    $region228: #{concat_net.1} parent=220 // loop_exit
      _
  $region221: #{concat_net.1} parent=0 // pred_fallthru
    _
  // Predicated region
  $region244: #{concat_net.1} parent=0 // pred_check
    _
  $region245: #{concat_net.1} parent=0 // pred_check_branch
    %421 = sbr.rel (0) target = $region247
  $region246: #{concat_net.1} parent=0 // pred_region
    %422 = vsyncadd %s366, 1024
  $region247: #{concat_net.1} parent=0 // pred_fallthru
    _
  %s423 = scalar_lea.vmem %s1, 448
  %s424 = scalar_lea.vmem [#allocation2], 448
  %s425 = scalar_lea.sflag [#allocation3], 7
  %p427 = scmp.lt.u32.totalorder 64, 8
  %p428 = pneg %p427
  // Predicated region
  $region248: #{concat_net.1} parent=0 // pred_check
    _
  $region249: #{concat_net.1} parent=0 // pred_check_branch
    %430 = sbr.rel (%p427) target = $region251
  $region250: #{concat_net.1} parent=0 // pred_region
    %s445 = sand.u32 64, 7
    %p446 = scmp.eq.s32.totalorder %s445, 0
    // Predicated region
    $region263: #{concat_net.1} parent=250 // pred_check
      %p447 = pneg %p446
    $region264: #{concat_net.1} parent=250 // pred_check_branch
      %449 = sbr.rel (%p447) target = $region266
    $region265: #{concat_net.1} parent=250 // pred_region
      loop: start=0, step=1, limit=1
      $region267: #{concat_net.1} parent=265 // loop_pre_header
        _
      $region268: #{concat_net.1} parent=265 // loop_header
        %s451 = sphi 0, %s455
        %p452 = scmp.ge.s32.totalorder %s451, 1
        %s456 = sphi %s423, %s423
        %s457 = sphi %s424, %s424
      $region269: #{concat_net.1} parent=265 // loop_header_branch
        %454 = sbr.rel (%p452) target = $region273
      $region270: #{concat_net.1} parent=265 // loop_body
        %v458 = vld [vmem:[%s456] sm:$0xff]
        %459 = vst [vmem:[%s457] sm:$0xff] %v458
        %v460 = vld [vmem:[%s456 + $0x8] sm:$0xff]
        %461 = vst [vmem:[%s457 + $0x8] sm:$0xff] %v460
        %v462 = vld [vmem:[%s456 + $0x10] sm:$0xff]
        %463 = vst [vmem:[%s457 + $0x10] sm:$0xff] %v462
        %v464 = vld [vmem:[%s456 + $0x18] sm:$0xff]
        %465 = vst [vmem:[%s457 + $0x18] sm:$0xff] %v464
        %v466 = vld [vmem:[%s456 + $0x20] sm:$0xff]
        %467 = vst [vmem:[%s457 + $0x20] sm:$0xff] %v466
        %v468 = vld [vmem:[%s456 + $0x28] sm:$0xff]
        %469 = vst [vmem:[%s457 + $0x28] sm:$0xff] %v468
        %v470 = vld [vmem:[%s456 + $0x30] sm:$0xff]
        %471 = vst [vmem:[%s457 + $0x30] sm:$0xff] %v470
        %v472 = vld [vmem:[%s456 + $0x38] sm:$0xff]
        %473 = vst [vmem:[%s457 + $0x38] sm:$0xff] %v472
      $region271: #{concat_net.1} parent=265 // loop_footer
        %s455 = sadd.s32 1, %s451
      $region272: #{concat_net.1} parent=265 // loop_footer_branch
        %450 = sbr.rel target = $region268
      $region273: #{concat_net.1} parent=265 // loop_exit
        _
    $region266: #{concat_net.1} parent=250 // pred_fallthru
      _
    %p474 = pneg %p446
    // Predicated region
    $region274: #{concat_net.1} parent=250 // pred_check
      _
    $region275: #{concat_net.1} parent=250 // pred_check_branch
      %476 = sbr.rel (%p446) target = $region277
    $region276: #{concat_net.1} parent=250 // pred_region
      %s477 = sand.u32 64, 7
    $region277: #{concat_net.1} parent=250 // pred_fallthru
      _
  $region251: #{concat_net.1} parent=0 // pred_fallthru
    _
  // Predicated region
  $region252: #{concat_net.1} parent=0 // pred_check
    %p431 = pneg %p427
  $region253: #{concat_net.1} parent=0 // pred_check_branch
    %433 = sbr.rel (%p431) target = $region255
  $region254: #{concat_net.1} parent=0 // pred_region
    %s434 = sshllo.u32 0, 64
    loop: start=0, step=1, limit=1
    $region256: #{concat_net.1} parent=254 // loop_pre_header
      _
    $region257: #{concat_net.1} parent=254 // loop_header
      %s436 = sphi 0, %s440
      %p437 = scmp.ge.s32.totalorder %s436, 1
      %s441 = sphi %s423, %s423
      %s442 = sphi %s424, %s424
    $region258: #{concat_net.1} parent=254 // loop_header_branch
      %439 = sbr.rel (%p437) target = $region262
    $region259: #{concat_net.1} parent=254 // loop_body
      %v443 = vld [vmem:[%s441] sm:%s434]
      %444 = vst [vmem:[%s442] sm:%s434] %v443
    $region260: #{concat_net.1} parent=254 // loop_footer
      %s440 = sadd.s32 1, %s436
    $region261: #{concat_net.1} parent=254 // loop_footer_branch
      %435 = sbr.rel target = $region257
    $region262: #{concat_net.1} parent=254 // loop_exit
      _
  $region255: #{concat_net.1} parent=0 // pred_fallthru
    _
  // Predicated region
  $region278: #{concat_net.1} parent=0 // pred_check
    _
  $region279: #{concat_net.1} parent=0 // pred_check_branch
    %480 = sbr.rel (0) target = $region281
  $region280: #{concat_net.1} parent=0 // pred_region
    %481 = vsyncadd %s425, 1024
  $region281: #{concat_net.1} parent=0 // pred_fallthru
    _
  %s482 = scalar_lea.vmem %s1, 512
  %s483 = scalar_lea.vmem [#allocation2], 512
  %s484 = scalar_lea.sflag [#allocation3], 8
  %p486 = scmp.lt.u32.totalorder 64, 8
  %p487 = pneg %p486
  // Predicated region
  $region282: #{concat_net.1} parent=0 // pred_check
    _
  $region283: #{concat_net.1} parent=0 // pred_check_branch
    %489 = sbr.rel (%p486) target = $region285
  $region284: #{concat_net.1} parent=0 // pred_region
    %s504 = sand.u32 64, 7
    %p505 = scmp.eq.s32.totalorder %s504, 0
    // Predicated region
    $region297: #{concat_net.1} parent=284 // pred_check
      %p506 = pneg %p505
    $region298: #{concat_net.1} parent=284 // pred_check_branch
      %508 = sbr.rel (%p506) target = $region300
    $region299: #{concat_net.1} parent=284 // pred_region
      loop: start=0, step=1, limit=1
      $region301: #{concat_net.1} parent=299 // loop_pre_header
        _
      $region302: #{concat_net.1} parent=299 // loop_header
        %s510 = sphi 0, %s514
        %p511 = scmp.ge.s32.totalorder %s510, 1
        %s515 = sphi %s482, %s482
        %s516 = sphi %s483, %s483
      $region303: #{concat_net.1} parent=299 // loop_header_branch
        %513 = sbr.rel (%p511) target = $region307
      $region304: #{concat_net.1} parent=299 // loop_body
        %v517 = vld [vmem:[%s515] sm:$0xff]
        %518 = vst [vmem:[%s516] sm:$0xff] %v517
        %v519 = vld [vmem:[%s515 + $0x8] sm:$0xff]
        %520 = vst [vmem:[%s516 + $0x8] sm:$0xff] %v519
        %v521 = vld [vmem:[%s515 + $0x10] sm:$0xff]
        %522 = vst [vmem:[%s516 + $0x10] sm:$0xff] %v521
        %v523 = vld [vmem:[%s515 + $0x18] sm:$0xff]
        %524 = vst [vmem:[%s516 + $0x18] sm:$0xff] %v523
        %v525 = vld [vmem:[%s515 + $0x20] sm:$0xff]
        %526 = vst [vmem:[%s516 + $0x20] sm:$0xff] %v525
        %v527 = vld [vmem:[%s515 + $0x28] sm:$0xff]
        %528 = vst [vmem:[%s516 + $0x28] sm:$0xff] %v527
        %v529 = vld [vmem:[%s515 + $0x30] sm:$0xff]
        %530 = vst [vmem:[%s516 + $0x30] sm:$0xff] %v529
        %v531 = vld [vmem:[%s515 + $0x38] sm:$0xff]
        %532 = vst [vmem:[%s516 + $0x38] sm:$0xff] %v531
      $region305: #{concat_net.1} parent=299 // loop_footer
        %s514 = sadd.s32 1, %s510
      $region306: #{concat_net.1} parent=299 // loop_footer_branch
        %509 = sbr.rel target = $region302
      $region307: #{concat_net.1} parent=299 // loop_exit
        _
    $region300: #{concat_net.1} parent=284 // pred_fallthru
      _
    %p533 = pneg %p505
    // Predicated region
    $region308: #{concat_net.1} parent=284 // pred_check
      _
    $region309: #{concat_net.1} parent=284 // pred_check_branch
      %535 = sbr.rel (%p505) target = $region311
    $region310: #{concat_net.1} parent=284 // pred_region
      %s536 = sand.u32 64, 7
    $region311: #{concat_net.1} parent=284 // pred_fallthru
      _
  $region285: #{concat_net.1} parent=0 // pred_fallthru
    _
  // Predicated region
  $region286: #{concat_net.1} parent=0 // pred_check
    %p490 = pneg %p486
  $region287: #{concat_net.1} parent=0 // pred_check_branch
    %492 = sbr.rel (%p490) target = $region289
  $region288: #{concat_net.1} parent=0 // pred_region
    %s493 = sshllo.u32 0, 64
    loop: start=0, step=1, limit=1
    $region290: #{concat_net.1} parent=288 // loop_pre_header
      _
    $region291: #{concat_net.1} parent=288 // loop_header
      %s495 = sphi 0, %s499
      %p496 = scmp.ge.s32.totalorder %s495, 1
      %s500 = sphi %s482, %s482
      %s501 = sphi %s483, %s483
    $region292: #{concat_net.1} parent=288 // loop_header_branch
      %498 = sbr.rel (%p496) target = $region296
    $region293: #{concat_net.1} parent=288 // loop_body
      %v502 = vld [vmem:[%s500] sm:%s493]
      %503 = vst [vmem:[%s501] sm:%s493] %v502
    $region294: #{concat_net.1} parent=288 // loop_footer
      %s499 = sadd.s32 1, %s495
    $region295: #{concat_net.1} parent=288 // loop_footer_branch
      %494 = sbr.rel target = $region291
    $region296: #{concat_net.1} parent=288 // loop_exit
      _
  $region289: #{concat_net.1} parent=0 // pred_fallthru
    _
  // Predicated region
  $region312: #{concat_net.1} parent=0 // pred_check
    _
  $region313: #{concat_net.1} parent=0 // pred_check_branch
    %539 = sbr.rel (0) target = $region315
  $region314: #{concat_net.1} parent=0 // pred_region
    %540 = vsyncadd %s484, 1024
  $region315: #{concat_net.1} parent=0 // pred_fallthru
    _
  %v541 = vld [vmem:[%s0] sm:$0xff]
  %v542 = vld [vmem:[%s2] sm:$0x1]
  %s543 = smul.u32 4, 16
  %s544 = smul.u32 %s543, 1
  %s545 = sshll.u32 %s544, 4
  %546 = dma.done [#allocation3], %s545
  %v547 = vpack.c.bf16 %v541, %v541
  %v548 = vld [vmem:[#allocation2] sm:$0xff]
  %v549 = vld [vmem:[#allocation2 + $0x8] sm:$0xff]
  %v550 = vld [vmem:[#allocation2 + $0x10] sm:$0xff]
  %v551 = vld [vmem:[#allocation2 + $0x18] sm:$0xff]
  %v552 = vld [vmem:[#allocation2 + $0x20] sm:$0xff]
  %v553 = vld [vmem:[#allocation2 + $0x28] sm:$0xff]
  %v554 = vld [vmem:[#allocation2 + $0x30] sm:$0xff]
  %v555 = vld [vmem:[#allocation2 + $0x38] sm:$0xff]
  %v556 = vlaneseq
  %v557 = vshrl.u32 %v556, 7
  %v558 = vsub.s32 0, %v557
  %v559 = vrot.slane %v542, %v558
  %560 = vmatprep.subr.bf16.mxu0 0
  %561 = vmatpush1.bf16.msra.mxu0 %v548
  %562 = vmatprep.subr.bf16.mxu0 0
  %563 = vmatpush1.bf16.msra.mxu0 %v549
  %564 = vmatprep.subr.bf16.mxu0 0
  %565 = vmatpush1.bf16.msra.mxu0 %v550
  %566 = vmatprep.subr.bf16.mxu0 0
  %567 = vmatpush1.bf16.msra.mxu0 %v551
  %568 = vmatprep.subr.bf16.mxu0 0
  %569 = vmatpush1.bf16.msra.mxu0 %v552
  %570 = vmatprep.subr.bf16.mxu0 0
  %571 = vmatpush1.bf16.msra.mxu0 %v553
  %572 = vmatprep.subr.bf16.mxu0 0
  %573 = vmatpush1.bf16.msra.mxu0 %v554
  %574 = vmatprep.subr.bf16.mxu0 0
  %575 = vmatpush1.bf16.msra.mxu0 %v555
  %576 = vmatprep.subr.bf16.mxu0 0
  %577 = vmatpush1.bf16.msra.mxu0 0
  %578 = vmatprep.subr.bf16.mxu0 0
  %579 = vmatpush1.bf16.msra.mxu0 0
  %580 = vmatprep.subr.bf16.mxu0 0
  %581 = vmatpush1.bf16.msra.mxu0 0
  %582 = vmatprep.subr.bf16.mxu0 0
  %583 = vmatpush1.bf16.msra.mxu0 0
  %584 = vmatprep.subr.bf16.mxu0 0
  %585 = vmatpush1.bf16.msra.mxu0 0
  %586 = vmatprep.subr.bf16.mxu0 0
  %587 = vmatpush1.bf16.msra.mxu0 0
  %588 = vmatprep.subr.bf16.mxu0 0
  %589 = vmatpush1.bf16.msra.mxu0 0
  %590 = vmatprep.subr.bf16.mxu0 0
  %591 = vmatpush1.bf16.msra.mxu0 0
  %592 = vmatprep.mubr.bf16.mxu0 0
  %593 = vmatmul.mubr.bf16.gmra.mrb[0].mxu0 %v547
  %v594 = vpop.f32.mrb[0].mxu0
  %v595 = vadd.f32 %v559, %v594
  %v596 = vpop.f32.mrb[0].mxu0
  %v597 = vpop.f32.mrb[0].mxu0
  %v598 = vpop.f32.mrb[0].mxu0
  %599 = vdwg.mxu0
  %v600 = vmul.f32 %v595, 0.01
  %v601 = vmax.f32 %v595, %v600
  %v602 = vld [vmem:[%s2 + $0x1] sm:$0x1]
  %s603 = sshll.u32 %s544, 4
  %604 = dma.done %s71, %s603
  %v605 = vpack.c.bf16 %v601, %v601
  %v606 = vld [vmem:[%s70] sm:$0xff]
  %v607 = vld [vmem:[%s70 + $0x8] sm:$0xff]
  %v608 = vld [vmem:[%s70 + $0x10] sm:$0xff]
  %v609 = vld [vmem:[%s70 + $0x18] sm:$0xff]
  %v610 = vld [vmem:[%s70 + $0x20] sm:$0xff]
  %v611 = vld [vmem:[%s70 + $0x28] sm:$0xff]
  %v612 = vld [vmem:[%s70 + $0x30] sm:$0xff]
  %v613 = vld [vmem:[%s70 + $0x38] sm:$0xff]
  %v614 = vlaneseq
  %v615 = vshrl.u32 %v614, 7
  %v616 = vsub.s32 0, %v615
  %v617 = vrot.slane %v602, %v616
  %618 = vmatprep.subr.bf16.mxu0 0
  %619 = vmatpush1.bf16.msra.mxu0 %v606
  %620 = vmatprep.subr.bf16.mxu0 0
  %621 = vmatpush1.bf16.msra.mxu0 %v607
  %622 = vmatprep.subr.bf16.mxu0 0
  %623 = vmatpush1.bf16.msra.mxu0 %v608
  %624 = vmatprep.subr.bf16.mxu0 0
  %625 = vmatpush1.bf16.msra.mxu0 %v609
  %626 = vmatprep.subr.bf16.mxu0 0
  %627 = vmatpush1.bf16.msra.mxu0 %v610
  %628 = vmatprep.subr.bf16.mxu0 0
  %629 = vmatpush1.bf16.msra.mxu0 %v611
  %630 = vmatprep.subr.bf16.mxu0 0
  %631 = vmatpush1.bf16.msra.mxu0 %v612
  %632 = vmatprep.subr.bf16.mxu0 0
  %633 = vmatpush1.bf16.msra.mxu0 %v613
  %634 = vmatprep.subr.bf16.mxu0 0
  %635 = vmatpush1.bf16.msra.mxu0 0
  %636 = vmatprep.subr.bf16.mxu0 0
  %637 = vmatpush1.bf16.msra.mxu0 0
  %638 = vmatprep.subr.bf16.mxu0 0
  %639 = vmatpush1.bf16.msra.mxu0 0
  %640 = vmatprep.subr.bf16.mxu0 0
  %641 = vmatpush1.bf16.msra.mxu0 0
  %642 = vmatprep.subr.bf16.mxu0 0
  %643 = vmatpush1.bf16.msra.mxu0 0
  %644 = vmatprep.subr.bf16.mxu0 0
  %645 = vmatpush1.bf16.msra.mxu0 0
  %646 = vmatprep.subr.bf16.mxu0 0
  %647 = vmatpush1.bf16.msra.mxu0 0
  %648 = vmatprep.subr.bf16.mxu0 0
  %649 = vmatpush1.bf16.msra.mxu0 0
  %650 = vmatprep.mubr.bf16.mxu0 0
  %651 = vmatmul.mubr.bf16.gmra.mrb[0].mxu0 %v605
  %v652 = vpop.f32.mrb[0].mxu0
  %v653 = vadd.f32 %v617, %v652
  %v654 = vpop.f32.mrb[0].mxu0
  %v655 = vpop.f32.mrb[0].mxu0
  %v656 = vpop.f32.mrb[0].mxu0
  %657 = vdwg.mxu0
  %v658 = vmax.f32 %v653, 0.0
  %v659 = vrot.slane %v658, 4
  %v660 = vadd.f32 %v658, %v659
  %v661 = vrot.slane %v660, 2
  %v662 = vadd.f32 %v660, %v661
  %v663 = vrot.slane %v662, 1
  %v664 = vadd.f32 %v662, %v663
  %v665 = vmul.f32 %v664, 0.125
  %v666 = vmul.f32 %v658, %v658
  %v667 = vrot.slane %v666, 4
  %v668 = vadd.f32 %v666, %v667
  %v669 = vrot.slane %v668, 2
  %v670 = vadd.f32 %v668, %v669
  %v671 = vrot.slane %v670, 1
  %v672 = vadd.f32 %v670, %v671
  %v673 = vmul.f32 %v672, 0.125
  %v674 = vmul.f32 %v665, %v665
  %v675 = vsub.f32 %v673, %v674
  %v676 = vsub.f32 %v658, %v665
  %v677 = vld [vmem:[%s2 + $0x2] sm:$0x1]
  %v678 = vadd.f32 %v675, 1e-05
  %v679 = vrsqrt.pop %v678
  %v680 = vmul.f32 %v677, %v679
  %v681 = vlaneseq
  %v682 = vshrl.u32 %v681, 7
  %v683 = vsub.s32 0, %v682
  %v684 = vrot.slane %v680, %v683
  %v685 = vmul.f32 %v676, %v684
  %v686 = vld [vmem:[%s2 + $0x3] sm:$0x1]
  %s687 = sshll.u32 %s544, 4
  %688 = dma.done %s130, %s687
  %v689 = vpack.c.bf16 %v685, %v685
  %v690 = vld [vmem:[%s129] sm:$0xff]
  %v691 = vld [vmem:[%s129 + $0x8] sm:$0xff]
  %v692 = vld [vmem:[%s129 + $0x10] sm:$0xff]
  %v693 = vld [vmem:[%s129 + $0x18] sm:$0xff]
  %v694 = vld [vmem:[%s129 + $0x20] sm:$0xff]
  %v695 = vld [vmem:[%s129 + $0x28] sm:$0xff]
  %v696 = vld [vmem:[%s129 + $0x30] sm:$0xff]
  %v697 = vld [vmem:[%s129 + $0x38] sm:$0xff]
  %v698 = vlaneseq
  %v699 = vshrl.u32 %v698, 7
  %v700 = vsub.s32 0, %v699
  %v701 = vrot.slane %v686, %v700
  %702 = vmatprep.subr.bf16.mxu0 0
  %703 = vmatpush1.bf16.msra.mxu0 %v690
  %704 = vmatprep.subr.bf16.mxu0 0
  %705 = vmatpush1.bf16.msra.mxu0 %v691
  %706 = vmatprep.subr.bf16.mxu0 0
  %707 = vmatpush1.bf16.msra.mxu0 %v692
  %708 = vmatprep.subr.bf16.mxu0 0
  %709 = vmatpush1.bf16.msra.mxu0 %v693
  %710 = vmatprep.subr.bf16.mxu0 0
  %711 = vmatpush1.bf16.msra.mxu0 %v694
  %712 = vmatprep.subr.bf16.mxu0 0
  %713 = vmatpush1.bf16.msra.mxu0 %v695
  %714 = vmatprep.subr.bf16.mxu0 0
  %715 = vmatpush1.bf16.msra.mxu0 %v696
  %716 = vmatprep.subr.bf16.mxu0 0
  %717 = vmatpush1.bf16.msra.mxu0 %v697
  %718 = vmatprep.subr.bf16.mxu0 0
  %719 = vmatpush1.bf16.msra.mxu0 0
  %720 = vmatprep.subr.bf16.mxu0 0
  %721 = vmatpush1.bf16.msra.mxu0 0
  %722 = vmatprep.subr.bf16.mxu0 0
  %723 = vmatpush1.bf16.msra.mxu0 0
  %724 = vmatprep.subr.bf16.mxu0 0
  %725 = vmatpush1.bf16.msra.mxu0 0
  %726 = vmatprep.subr.bf16.mxu0 0
  %727 = vmatpush1.bf16.msra.mxu0 0
  %728 = vmatprep.subr.bf16.mxu0 0
  %729 = vmatpush1.bf16.msra.mxu0 0
  %730 = vmatprep.subr.bf16.mxu0 0
  %731 = vmatpush1.bf16.msra.mxu0 0
  %732 = vmatprep.subr.bf16.mxu0 0
  %733 = vmatpush1.bf16.msra.mxu0 0
  %734 = vmatprep.mubr.bf16.mxu0 0
  %735 = vmatmul.mubr.bf16.gmra.mrb[0].mxu0 %v689
  %v736 = vpop.f32.mrb[0].mxu0
  %v737 = vadd.f32 %v701, %v736
  %v738 = vpop.f32.mrb[0].mxu0
  %v739 = vpop.f32.mrb[0].mxu0
  %v740 = vpop.f32.mrb[0].mxu0
  %741 = vdwg.mxu0
  %v742 = vadd.f32 %v737, %v601
  %v743 = vmax.f32 %v742, 0.0
  %v744 = vld [vmem:[%s2 + $0x4] sm:$0x1]
  %s745 = sshll.u32 %s544, 4
  %746 = dma.done %s189, %s745
  %v747 = vpack.c.bf16 %v743, %v743
  %v748 = vld [vmem:[%s188] sm:$0xff]
  %v749 = vld [vmem:[%s188 + $0x8] sm:$0xff]
  %v750 = vld [vmem:[%s188 + $0x10] sm:$0xff]
  %v751 = vld [vmem:[%s188 + $0x18] sm:$0xff]
  %v752 = vld [vmem:[%s188 + $0x20] sm:$0xff]
  %v753 = vld [vmem:[%s188 + $0x28] sm:$0xff]
  %v754 = vld [vmem:[%s188 + $0x30] sm:$0xff]
  %v755 = vld [vmem:[%s188 + $0x38] sm:$0xff]
  %v756 = vlaneseq
  %v757 = vshrl.u32 %v756, 7
  %v758 = vsub.s32 0, %v757
  %v759 = vrot.slane %v744, %v758
  %760 = vmatprep.subr.bf16.mxu0 0
  %761 = vmatpush1.bf16.msra.mxu0 %v748
  %762 = vmatprep.subr.bf16.mxu0 0
  %763 = vmatpush1.bf16.msra.mxu0 %v749
  %764 = vmatprep.subr.bf16.mxu0 0
  %765 = vmatpush1.bf16.msra.mxu0 %v750
  %766 = vmatprep.subr.bf16.mxu0 0
  %767 = vmatpush1.bf16.msra.mxu0 %v751
  %768 = vmatprep.subr.bf16.mxu0 0
  %769 = vmatpush1.bf16.msra.mxu0 %v752
  %770 = vmatprep.subr.bf16.mxu0 0
  %771 = vmatpush1.bf16.msra.mxu0 %v753
  %772 = vmatprep.subr.bf16.mxu0 0
  %773 = vmatpush1.bf16.msra.mxu0 %v754
  %774 = vmatprep.subr.bf16.mxu0 0
  %775 = vmatpush1.bf16.msra.mxu0 %v755
  %776 = vmatprep.subr.bf16.mxu0 0
  %777 = vmatpush1.bf16.msra.mxu0 0
  %778 = vmatprep.subr.bf16.mxu0 0
  %779 = vmatpush1.bf16.msra.mxu0 0
  %780 = vmatprep.subr.bf16.mxu0 0
  %781 = vmatpush1.bf16.msra.mxu0 0
  %782 = vmatprep.subr.bf16.mxu0 0
  %783 = vmatpush1.bf16.msra.mxu0 0
  %784 = vmatprep.subr.bf16.mxu0 0
  %785 = vmatpush1.bf16.msra.mxu0 0
  %786 = vmatprep.subr.bf16.mxu0 0
  %787 = vmatpush1.bf16.msra.mxu0 0
  %788 = vmatprep.subr.bf16.mxu0 0
  %789 = vmatpush1.bf16.msra.mxu0 0
  %790 = vmatprep.subr.bf16.mxu0 0
  %791 = vmatpush1.bf16.msra.mxu0 0
  %792 = vmatprep.mubr.bf16.mxu0 0
  %793 = vmatmul.mubr.bf16.gmra.mrb[0].mxu0 %v747
  %v794 = vpop.f32.mrb[0].mxu0
  %v795 = vadd.f32 %v759, %v794
  %v796 = vpop.f32.mrb[0].mxu0
  %v797 = vpop.f32.mrb[0].mxu0
  %v798 = vpop.f32.mrb[0].mxu0
  %799 = vdwg.mxu0
  %v800 = vmul.f32 %v795, 0.01
  %v801 = vmax.f32 %v795, %v800
  %v802 = vld [vmem:[%s2 + $0x5] sm:$0x1]
  %s803 = sshll.u32 %s544, 4
  %804 = dma.done %s248, %s803
  %v805 = vpack.c.bf16 %v801, %v801
  %v806 = vld [vmem:[%s247] sm:$0xff]
  %v807 = vld [vmem:[%s247 + $0x8] sm:$0xff]
  %v808 = vld [vmem:[%s247 + $0x10] sm:$0xff]
  %v809 = vld [vmem:[%s247 + $0x18] sm:$0xff]
  %v810 = vld [vmem:[%s247 + $0x20] sm:$0xff]
  %v811 = vld [vmem:[%s247 + $0x28] sm:$0xff]
  %v812 = vld [vmem:[%s247 + $0x30] sm:$0xff]
  %v813 = vld [vmem:[%s247 + $0x38] sm:$0xff]
  %v814 = vlaneseq
  %v815 = vshrl.u32 %v814, 7
  %v816 = vsub.s32 0, %v815
  %v817 = vrot.slane %v802, %v816
  %818 = vmatprep.subr.bf16.mxu0 0
  %819 = vmatpush1.bf16.msra.mxu0 %v806
  %820 = vmatprep.subr.bf16.mxu0 0
  %821 = vmatpush1.bf16.msra.mxu0 %v807
  %822 = vmatprep.subr.bf16.mxu0 0
  %823 = vmatpush1.bf16.msra.mxu0 %v808
  %824 = vmatprep.subr.bf16.mxu0 0
  %825 = vmatpush1.bf16.msra.mxu0 %v809
  %826 = vmatprep.subr.bf16.mxu0 0
  %827 = vmatpush1.bf16.msra.mxu0 %v810
  %828 = vmatprep.subr.bf16.mxu0 0
  %829 = vmatpush1.bf16.msra.mxu0 %v811
  %830 = vmatprep.subr.bf16.mxu0 0
  %831 = vmatpush1.bf16.msra.mxu0 %v812
  %832 = vmatprep.subr.bf16.mxu0 0
  %833 = vmatpush1.bf16.msra.mxu0 %v813
  %834 = vmatprep.subr.bf16.mxu0 0
  %835 = vmatpush1.bf16.msra.mxu0 0
  %836 = vmatprep.subr.bf16.mxu0 0
  %837 = vmatpush1.bf16.msra.mxu0 0
  %838 = vmatprep.subr.bf16.mxu0 0
  %839 = vmatpush1.bf16.msra.mxu0 0
  %840 = vmatprep.subr.bf16.mxu0 0
  %841 = vmatpush1.bf16.msra.mxu0 0
  %842 = vmatprep.subr.bf16.mxu0 0
  %843 = vmatpush1.bf16.msra.mxu0 0
  %844 = vmatprep.subr.bf16.mxu0 0
  %845 = vmatpush1.bf16.msra.mxu0 0
  %846 = vmatprep.subr.bf16.mxu0 0
  %847 = vmatpush1.bf16.msra.mxu0 0
  %848 = vmatprep.subr.bf16.mxu0 0
  %849 = vmatpush1.bf16.msra.mxu0 0
  %850 = vmatprep.mubr.bf16.mxu0 0
  %851 = vmatmul.mubr.bf16.gmra.mrb[0].mxu0 %v805
  %v852 = vpop.f32.mrb[0].mxu0
  %v853 = vadd.f32 %v817, %v852
  %v854 = vpop.f32.mrb[0].mxu0
  %v855 = vpop.f32.mrb[0].mxu0
  %v856 = vpop.f32.mrb[0].mxu0
  %857 = vdwg.mxu0
  %v858 = vmul.f32 %v853, 0.01
  %v859 = vmax.f32 %v853, %v858
  %v860 = vld [vmem:[%s2 + $0x6] sm:$0x1]
  %s861 = sshll.u32 %s544, 4
  %862 = dma.done %s307, %s861
  %v863 = vpack.c.bf16 %v859, %v859
  %v864 = vld [vmem:[%s306] sm:$0xff]
  %v865 = vld [vmem:[%s306 + $0x8] sm:$0xff]
  %v866 = vld [vmem:[%s306 + $0x10] sm:$0xff]
  %v867 = vld [vmem:[%s306 + $0x18] sm:$0xff]
  %v868 = vld [vmem:[%s306 + $0x20] sm:$0xff]
  %v869 = vld [vmem:[%s306 + $0x28] sm:$0xff]
  %v870 = vld [vmem:[%s306 + $0x30] sm:$0xff]
  %v871 = vld [vmem:[%s306 + $0x38] sm:$0xff]
  %v872 = vlaneseq
  %v873 = vshrl.u32 %v872, 7
  %v874 = vsub.s32 0, %v873
  %v875 = vrot.slane %v860, %v874
  %876 = vmatprep.subr.bf16.mxu0 0
  %877 = vmatpush1.bf16.msra.mxu0 %v864
  %878 = vmatprep.subr.bf16.mxu0 0
  %879 = vmatpush1.bf16.msra.mxu0 %v865
  %880 = vmatprep.subr.bf16.mxu0 0
  %881 = vmatpush1.bf16.msra.mxu0 %v866
  %882 = vmatprep.subr.bf16.mxu0 0
  %883 = vmatpush1.bf16.msra.mxu0 %v867
  %884 = vmatprep.subr.bf16.mxu0 0
  %885 = vmatpush1.bf16.msra.mxu0 %v868
  %886 = vmatprep.subr.bf16.mxu0 0
  %887 = vmatpush1.bf16.msra.mxu0 %v869
  %888 = vmatprep.subr.bf16.mxu0 0
  %889 = vmatpush1.bf16.msra.mxu0 %v870
  %890 = vmatprep.subr.bf16.mxu0 0
  %891 = vmatpush1.bf16.msra.mxu0 %v871
  %892 = vmatprep.subr.bf16.mxu0 0
  %893 = vmatpush1.bf16.msra.mxu0 0
  %894 = vmatprep.subr.bf16.mxu0 0
  %895 = vmatpush1.bf16.msra.mxu0 0
  %896 = vmatprep.subr.bf16.mxu0 0
  %897 = vmatpush1.bf16.msra.mxu0 0
  %898 = vmatprep.subr.bf16.mxu0 0
  %899 = vmatpush1.bf16.msra.mxu0 0
  %900 = vmatprep.subr.bf16.mxu0 0
  %901 = vmatpush1.bf16.msra.mxu0 0
  %902 = vmatprep.subr.bf16.mxu0 0
  %903 = vmatpush1.bf16.msra.mxu0 0
  %904 = vmatprep.subr.bf16.mxu0 0
  %905 = vmatpush1.bf16.msra.mxu0 0
  %906 = vmatprep.subr.bf16.mxu0 0
  %907 = vmatpush1.bf16.msra.mxu0 0
  %908 = vmatprep.mubr.bf16.mxu0 0
  %909 = vmatmul.mubr.bf16.gmra.mrb[0].mxu0 %v863
  %v910 = vpop.f32.mrb[0].mxu0
  %v911 = vadd.f32 %v875, %v910
  %v912 = vpop.f32.mrb[0].mxu0
  %v913 = vpop.f32.mrb[0].mxu0
  %v914 = vpop.f32.mrb[0].mxu0
  %915 = vdwg.mxu0
  %v916 = vmax.f32 %v911, 0.0
  %v917 = vrot.slane %v916, 4
  %v918 = vadd.f32 %v916, %v917
  %v919 = vrot.slane %v918, 2
  %v920 = vadd.f32 %v918, %v919
  %v921 = vrot.slane %v920, 1
  %v922 = vadd.f32 %v920, %v921
  %v923 = vmul.f32 %v922, 0.125
  %v924 = vmul.f32 %v916, %v916
  %v925 = vrot.slane %v924, 4
  %v926 = vadd.f32 %v924, %v925
  %v927 = vrot.slane %v926, 2
  %v928 = vadd.f32 %v926, %v927
  %v929 = vrot.slane %v928, 1
  %v930 = vadd.f32 %v928, %v929
  %v931 = vmul.f32 %v930, 0.125
  %v932 = vmul.f32 %v923, %v923
  %v933 = vsub.f32 %v931, %v932
  %v934 = vsub.f32 %v916, %v923
  %v935 = vld [vmem:[%s2 + $0x7] sm:$0x1]
  %v936 = vadd.f32 %v933, 1e-05
  %v937 = vrsqrt.pop %v936
  %v938 = vmul.f32 %v935, %v937
  %v939 = vlaneseq
  %v940 = vshrl.u32 %v939, 7
  %v941 = vsub.s32 0, %v940
  %v942 = vrot.slane %v938, %v941
  %v943 = vmul.f32 %v934, %v942
  %v944 = vld [vmem:[%s2 + $0x8] sm:$0x1]
  %s945 = sshll.u32 %s544, 4
  %946 = dma.done %s366, %s945
  %v947 = vpack.c.bf16 %v943, %v943
  %v948 = vld [vmem:[%s365] sm:$0xff]
  %v949 = vld [vmem:[%s365 + $0x8] sm:$0xff]
  %v950 = vld [vmem:[%s365 + $0x10] sm:$0xff]
  %v951 = vld [vmem:[%s365 + $0x18] sm:$0xff]
  %v952 = vld [vmem:[%s365 + $0x20] sm:$0xff]
  %v953 = vld [vmem:[%s365 + $0x28] sm:$0xff]
  %v954 = vld [vmem:[%s365 + $0x30] sm:$0xff]
  %v955 = vld [vmem:[%s365 + $0x38] sm:$0xff]
  %v956 = vlaneseq
  %v957 = vshrl.u32 %v956, 7
  %v958 = vsub.s32 0, %v957
  %v959 = vrot.slane %v944, %v958
  %960 = vmatprep.subr.bf16.mxu0 0
  %961 = vmatpush1.bf16.msra.mxu0 %v948
  %962 = vmatprep.subr.bf16.mxu0 0
  %963 = vmatpush1.bf16.msra.mxu0 %v949
  %964 = vmatprep.subr.bf16.mxu0 0
  %965 = vmatpush1.bf16.msra.mxu0 %v950
  %966 = vmatprep.subr.bf16.mxu0 0
  %967 = vmatpush1.bf16.msra.mxu0 %v951
  %968 = vmatprep.subr.bf16.mxu0 0
  %969 = vmatpush1.bf16.msra.mxu0 %v952
  %970 = vmatprep.subr.bf16.mxu0 0
  %971 = vmatpush1.bf16.msra.mxu0 %v953
  %972 = vmatprep.subr.bf16.mxu0 0
  %973 = vmatpush1.bf16.msra.mxu0 %v954
  %974 = vmatprep.subr.bf16.mxu0 0
  %975 = vmatpush1.bf16.msra.mxu0 %v955
  %976 = vmatprep.subr.bf16.mxu0 0
  %977 = vmatpush1.bf16.msra.mxu0 0
  %978 = vmatprep.subr.bf16.mxu0 0
  %979 = vmatpush1.bf16.msra.mxu0 0
  %980 = vmatprep.subr.bf16.mxu0 0
  %981 = vmatpush1.bf16.msra.mxu0 0
  %982 = vmatprep.subr.bf16.mxu0 0
  %983 = vmatpush1.bf16.msra.mxu0 0
  %984 = vmatprep.subr.bf16.mxu0 0
  %985 = vmatpush1.bf16.msra.mxu0 0
  %986 = vmatprep.subr.bf16.mxu0 0
  %987 = vmatpush1.bf16.msra.mxu0 0
  %988 = vmatprep.subr.bf16.mxu0 0
  %989 = vmatpush1.bf16.msra.mxu0 0
  %990 = vmatprep.subr.bf16.mxu0 0
  %991 = vmatpush1.bf16.msra.mxu0 0
  %992 = vmatprep.mubr.bf16.mxu0 0
  %993 = vmatmul.mubr.bf16.gmra.mrb[0].mxu0 %v947
  %v994 = vpop.f32.mrb[0].mxu0
  %v995 = vadd.f32 %v959, %v994
  %v996 = vpop.f32.mrb[0].mxu0
  %v997 = vpop.f32.mrb[0].mxu0
  %v998 = vpop.f32.mrb[0].mxu0
  %999 = vdwg.mxu0
  %v1000 = vadd.f32 %v995, %v859
  %v1001 = vmax.f32 %v1000, 0.0
  %v1002 = vld [vmem:[%s2 + $0x9] sm:$0x1]
  %s1003 = sshll.u32 %s544, 4
  %1004 = dma.done %s425, %s1003
  %v1005 = vpack.c.bf16 %v1001, %v1001
  %v1006 = vld [vmem:[%s424] sm:$0xff]
  %v1007 = vld [vmem:[%s424 + $0x8] sm:$0xff]
  %v1008 = vld [vmem:[%s424 + $0x10] sm:$0xff]
  %v1009 = vld [vmem:[%s424 + $0x18] sm:$0xff]
  %v1010 = vld [vmem:[%s424 + $0x20] sm:$0xff]
  %v1011 = vld [vmem:[%s424 + $0x28] sm:$0xff]
  %v1012 = vld [vmem:[%s424 + $0x30] sm:$0xff]
  %v1013 = vld [vmem:[%s424 + $0x38] sm:$0xff]
  %v1014 = vlaneseq
  %v1015 = vshrl.u32 %v1014, 7
  %v1016 = vsub.s32 0, %v1015
  %v1017 = vrot.slane %v1002, %v1016
  %1018 = vmatprep.subr.bf16.mxu0 0
  %1019 = vmatpush1.bf16.msra.mxu0 %v1006
  %1020 = vmatprep.subr.bf16.mxu0 0
  %1021 = vmatpush1.bf16.msra.mxu0 %v1007
  %1022 = vmatprep.subr.bf16.mxu0 0
  %1023 = vmatpush1.bf16.msra.mxu0 %v1008
  %1024 = vmatprep.subr.bf16.mxu0 0
  %1025 = vmatpush1.bf16.msra.mxu0 %v1009
  %1026 = vmatprep.subr.bf16.mxu0 0
  %1027 = vmatpush1.bf16.msra.mxu0 %v1010
  %1028 = vmatprep.subr.bf16.mxu0 0
  %1029 = vmatpush1.bf16.msra.mxu0 %v1011
  %1030 = vmatprep.subr.bf16.mxu0 0
  %1031 = vmatpush1.bf16.msra.mxu0 %v1012
  %1032 = vmatprep.subr.bf16.mxu0 0
  %1033 = vmatpush1.bf16.msra.mxu0 %v1013
  %1034 = vmatprep.subr.bf16.mxu0 0
  %1035 = vmatpush1.bf16.msra.mxu0 0
  %1036 = vmatprep.subr.bf16.mxu0 0
  %1037 = vmatpush1.bf16.msra.mxu0 0
  %1038 = vmatprep.subr.bf16.mxu0 0
  %1039 = vmatpush1.bf16.msra.mxu0 0
  %1040 = vmatprep.subr.bf16.mxu0 0
  %1041 = vmatpush1.bf16.msra.mxu0 0
  %1042 = vmatprep.subr.bf16.mxu0 0
  %1043 = vmatpush1.bf16.msra.mxu0 0
  %1044 = vmatprep.subr.bf16.mxu0 0
  %1045 = vmatpush1.bf16.msra.mxu0 0
  %1046 = vmatprep.subr.bf16.mxu0 0
  %1047 = vmatpush1.bf16.msra.mxu0 0
  %1048 = vmatprep.subr.bf16.mxu0 0
  %1049 = vmatpush1.bf16.msra.mxu0 0
  %1050 = vmatprep.mubr.bf16.mxu0 0
  %1051 = vmatmul.mubr.bf16.gmra.mrb[0].mxu0 %v1005
  %v1052 = vpop.f32.mrb[0].mxu0
  %v1053 = vadd.f32 %v1017, %v1052
  %v1054 = vpop.f32.mrb[0].mxu0
  %v1055 = vpop.f32.mrb[0].mxu0
  %v1056 = vpop.f32.mrb[0].mxu0
  %1057 = vdwg.mxu0
  %v1058 = vmax.f32 %v1053, 0.0
  %v1059 = vrot.slane %v1058, 4
  %v1060 = vadd.f32 %v1058, %v1059
  %v1061 = vrot.slane %v1060, 2
  %v1062 = vadd.f32 %v1060, %v1061
  %v1063 = vrot.slane %v1062, 1
  %v1064 = vadd.f32 %v1062, %v1063
  %v1065 = vmul.f32 %v1064, 0.125
  %v1066 = vmul.f32 %v1058, %v1058
  %v1067 = vrot.slane %v1066, 4
  %v1068 = vadd.f32 %v1066, %v1067
  %v1069 = vrot.slane %v1068, 2
  %v1070 = vadd.f32 %v1068, %v1069
  %v1071 = vrot.slane %v1070, 1
  %v1072 = vadd.f32 %v1070, %v1071
  %v1073 = vmul.f32 %v1072, 0.125
  %v1074 = vmul.f32 %v1065, %v1065
  %v1075 = vsub.f32 %v1073, %v1074
  %v1076 = vsub.f32 %v1058, %v1065
  %v1077 = vld [vmem:[%s2 + $0xa] sm:$0x1]
  %v1078 = vadd.f32 %v1075, 1e-05
  %v1079 = vrsqrt.pop %v1078
  %v1080 = vmul.f32 %v1077, %v1079
  %v1081 = vlaneseq
  %v1082 = vshrl.u32 %v1081, 7
  %v1083 = vsub.s32 0, %v1082
  %v1084 = vrot.slane %v1080, %v1083
  %v1085 = vmul.f32 %v1076, %v1084
  %v1086 = vld [vmem:[%s2 + $0xb] sm:$0x1]
  %s1087 = sshll.u32 %s544, 4
  %1088 = dma.done %s484, %s1087
  %v1089 = vpack.c.bf16 %v1085, %v1085
  %v1090 = vld [vmem:[%s483] sm:$0xff]
  %v1091 = vld [vmem:[%s483 + $0x8] sm:$0xff]
  %v1092 = vld [vmem:[%s483 + $0x10] sm:$0xff]
  %v1093 = vld [vmem:[%s483 + $0x18] sm:$0xff]
  %v1094 = vld [vmem:[%s483 + $0x20] sm:$0xff]
  %v1095 = vld [vmem:[%s483 + $0x28] sm:$0xff]
  %v1096 = vld [vmem:[%s483 + $0x30] sm:$0xff]
  %v1097 = vld [vmem:[%s483 + $0x38] sm:$0xff]
  %v1098 = vlaneseq
  %v1099 = vshrl.u32 %v1098, 7
  %v1100 = vsub.s32 0, %v1099
  %v1101 = vrot.slane %v1086, %v1100
  %1102 = vmatprep.subr.bf16.mxu0 0
  %1103 = vmatpush1.bf16.msra.mxu0 %v1090
  %1104 = vmatprep.subr.bf16.mxu0 0
  %1105 = vmatpush1.bf16.msra.mxu0 %v1091
  %1106 = vmatprep.subr.bf16.mxu0 0
  %1107 = vmatpush1.bf16.msra.mxu0 %v1092
  %1108 = vmatprep.subr.bf16.mxu0 0
  %1109 = vmatpush1.bf16.msra.mxu0 %v1093
  %1110 = vmatprep.subr.bf16.mxu0 0
  %1111 = vmatpush1.bf16.msra.mxu0 %v1094
  %1112 = vmatprep.subr.bf16.mxu0 0
  %1113 = vmatpush1.bf16.msra.mxu0 %v1095
  %1114 = vmatprep.subr.bf16.mxu0 0
  %1115 = vmatpush1.bf16.msra.mxu0 %v1096
  %1116 = vmatprep.subr.bf16.mxu0 0
  %1117 = vmatpush1.bf16.msra.mxu0 %v1097
  %1118 = vmatprep.subr.bf16.mxu0 0
  %1119 = vmatpush1.bf16.msra.mxu0 0
  %1120 = vmatprep.subr.bf16.mxu0 0
  %1121 = vmatpush1.bf16.msra.mxu0 0
  %1122 = vmatprep.subr.bf16.mxu0 0
  %1123 = vmatpush1.bf16.msra.mxu0 0
  %1124 = vmatprep.subr.bf16.mxu0 0
  %1125 = vmatpush1.bf16.msra.mxu0 0
  %1126 = vmatprep.subr.bf16.mxu0 0
  %1127 = vmatpush1.bf16.msra.mxu0 0
  %1128 = vmatprep.subr.bf16.mxu0 0
  %1129 = vmatpush1.bf16.msra.mxu0 0
  %1130 = vmatprep.subr.bf16.mxu0 0
  %1131 = vmatpush1.bf16.msra.mxu0 0
  %1132 = vmatprep.subr.bf16.mxu0 0
  %1133 = vmatpush1.bf16.msra.mxu0 0
  %1134 = vmatprep.mubr.bf16.mxu0 0
  %1135 = vmatmul.mubr.bf16.gmra.mrb[0].mxu0 %v1089
  %v1136 = vpop.f32.mrb[0].mxu0
  %v1137 = vadd.f32 %v1101, %v1136
  %v1138 = vpop.f32.mrb[0].mxu0
  %v1139 = vpop.f32.mrb[0].mxu0
  %v1140 = vpop.f32.mrb[0].mxu0
  %1141 = vdwg.mxu0
  %v1142 = vadd.f32 %v1137, %v1001
  %v1143 = vmax.f32 %v1142, 0.0
  %v1144 = vld [vmem:[%s2 + $0xc] sm:$0x1]
  %v1145 = vlaneseq
  %v1146 = vshrl.u32 %v1145, 7
  %v1147 = vsub.s32 0, %v1146
  %v1148 = vrot.slane %v1144, %v1147
  %v1149 = vmul.f32 %v1143, %v1148
  %1150 = vadd.xlane.f32.xlu0 %v1149
  %v1151 = vpop.xlane.xlu0 %1150
  %v1152 = vld [vmem:[%s2 + $0xd] sm:$0x1]
  %v1153 = vlaneseq
  %v1154 = vshrl.u32 %v1153, 7
  %v1155 = vsub.s32 0, %v1154
  %v1156 = vrot.slane %v1152, %v1155
  %v1157 = vadd.f32 %v1151, %v1156
  %vm1158 = vcmask 7168
  %1159 = vst.msk [vmem:[%s3] sm:$0xff] %vm1158, %v1157
  // Predicated region
  $region316: #{concat_net.1} parent=0 // pred_check
    _
  $region317: #{concat_net.1} parent=0 // pred_check_branch
    %1161 = sbr.rel (0) target = $region319
  $region318: #{concat_net.1} parent=0 // pred_region
    _
  $region319: #{concat_net.1} parent=0 // pred_fallthru
    _
  // Predicated region
  $region320: #{concat_net.1} parent=0 // pred_check
    _
  $region321: #{concat_net.1} parent=0 // pred_check_branch
    %1163 = sbr.rel (0) target = $region323
  $region322: #{concat_net.1} parent=0 // pred_region
    _
  $region323: #{concat_net.1} parent=0 // pred_fallthru
    _
  %1164 = vsyncmov [#allocation3]
  %s1165 = vpop.sfrf %1164
  %p1166 = scmp.eq.s32.totalorder %s1165, 0
  %p1167 = pneg %p1166
  %1169 = shalt.err (%p1167)
  %s1170 = scalar_lea.sflag [#allocation3], 1
  %1171 = vsyncmov %s1170
  %s1172 = vpop.sfrf %1171
  %p1173 = scmp.eq.s32.totalorder %s1172, 0
  %p1174 = pneg %p1173
  %1176 = shalt.err (%p1174)
  %s1177 = scalar_lea.sflag [#allocation3], 2
  %1178 = vsyncmov %s1177
  %s1179 = vpop.sfrf %1178
  %p1180 = scmp.eq.s32.totalorder %s1179, 0
  %p1181 = pneg %p1180
  %1183 = shalt.err (%p1181)
  %s1184 = scalar_lea.sflag [#allocation3], 3
  %1185 = vsyncmov %s1184
  %s1186 = vpop.sfrf %1185
  %p1187 = scmp.eq.s32.totalorder %s1186, 0
  %p1188 = pneg %p1187
  %1190 = shalt.err (%p1188)
  %s1191 = scalar_lea.sflag [#allocation3], 4
  %1192 = vsyncmov %s1191
  %s1193 = vpop.sfrf %1192
  %p1194 = scmp.eq.s32.totalorder %s1193, 0
  %p1195 = pneg %p1194
  %1197 = shalt.err (%p1195)
  %s1198 = scalar_lea.sflag [#allocation3], 5
  %1199 = vsyncmov %s1198
  %s1200 = vpop.sfrf %1199
  %p1201 = scmp.eq.s32.totalorder %s1200, 0
  %p1202 = pneg %p1201
  %1204 = shalt.err (%p1202)
  %s1205 = scalar_lea.sflag [#allocation3], 6
  %1206 = vsyncmov %s1205
  %s1207 = vpop.sfrf %1206
  %p1208 = scmp.eq.s32.totalorder %s1207, 0
  %p1209 = pneg %p1208
  %1211 = shalt.err (%p1209)
  %s1212 = scalar_lea.sflag [#allocation3], 7
  %1213 = vsyncmov %s1212
  %s1214 = vpop.sfrf %1213
  %p1215 = scmp.eq.s32.totalorder %s1214, 0
  %p1216 = pneg %p1215
  %1218 = shalt.err (%p1216)
  %s1219 = scalar_lea.sflag [#allocation3], 8
  %1220 = vsyncmov %s1219
  %s1221 = vpop.sfrf %1220
  %p1222 = scmp.eq.s32.totalorder %s1221, 0
  %p1223 = pneg %p1222
  %1225 = shalt.err (%p1223)

</llo_original>
